<compile_context>
chip_gen: v5e
topology: v5e:2x2
jax: 0.10.0
libtpu: 0.0.40
codegen_flags: <defaults>
</compile_context>

<pallas_src>
import jax
import jax.numpy as jnp
from jax import lax
from jax.experimental import pallas as pl
from jax.experimental.pallas import tpu as pltpu


IN_DIM = 1 * 28 * 28   # 784
H1 = 512
H2 = 256
OUT_DIM = 1


def _round_up(x, m):
    return ((x + m - 1) // m) * m


def _discriminator_kernel(x_ref, w1_ref, b1_ref, w2_ref, b2_ref, w3_ref, b3_ref,
                          o_ref):
    # x_ref: (tile_b, 784) f32 tile; cast to bf16 in-kernel (fused, no separate
    # XLA convert pass / extra HBM round-trip).
    x = x_ref[...].astype(jnp.bfloat16)

    # Linear(784 -> 512) + LeakyReLU(0.2); bf16 MXU inputs, f32 accumulate.
    h1 = jnp.dot(x, w1_ref[...], preferred_element_type=jnp.float32) + b1_ref[...]
    h1 = jnp.where(h1 > 0, h1, 0.2 * h1)

    # Linear(512 -> 256) + LeakyReLU(0.2).
    h2 = jnp.dot(h1.astype(jnp.bfloat16), w2_ref[...],
                 preferred_element_type=jnp.float32) + b2_ref[...]
    h2 = jnp.where(h2 > 0, h2, 0.2 * h2)

    # Linear(256 -> 1) + Sigmoid, computed lane-major in bf16:
    #   w3^T (1,256) contracted with h2 (tile_b,256) over the 256 axis
    #   -> logits (1, tile_b), so the output store is a dense lane row
    #   instead of a 128x zero-padded column block.
    logits = lax.dot_general(
        w3_ref[...], h2.astype(jnp.bfloat16),
        dimension_numbers=(((1,), (1,)), ((), ())),
        preferred_element_type=jnp.float32) + b3_ref[...]
    o_ref[...] = jax.nn.sigmoid(logits)


def _choose_tiling(B, max_tile=1024):
    """Pick (tile_b, B_pad).

    Constraints:
      * input block (tile_b, 784): tile_b % 8 == 0 (or == B_pad);
      * lane-major output block (1, tile_b): tile_b % 128 == 0 unless it is
        the only tile (tile_b == B_pad).
    Heuristics (perf review):
      * round small batches to 16 rows (bf16 sublane packing);
      * keep >= 2 grid steps for mid/large batches so both v7x TensorCores
        get work, but only if padding waste stays modest;
      * cap the tile at max_tile (multiple of 128) and bound padding waste
        for batch sizes just above a tile boundary.
    """
    max_tile = max(128, (max_tile // 128) * 128)
    B16 = _round_up(B, 16)

    if B16 <= 256:
        # Tiny batch: one small tile.
        return B16, B16

    if B16 <= max_tile:
        # Try 2 tiles (multiple of 128 each) so a v7x megacore can shard them.
        half = _round_up(pl.cdiv(B, 2), 128)
        if 2 * half - B <= max(B // 4, 128):
            return half, 2 * half
        # Padding too costly: single full tile.
        return B16, B16

    # Large batch: minimum number of tiles of (at most) max_tile, sized so
    # padding waste is bounded even for awkward B.
    n = pl.cdiv(B, max_tile)
    tile_b = _round_up(pl.cdiv(B, n), 128)
    return tile_b, n * tile_b


def preprocess_params(params):
    """One-time weight preprocessing (do NOT redo per forward call):
    bf16 W1/W2/W3, f32 biases, W3 stored transposed as (1, 256)."""
    w1, b1, w2, b2, w3, b3 = params
    return (
        w1.astype(jnp.bfloat16),                        # (784, 512)
        b1.reshape(1, H1).astype(jnp.float32),          # (1, 512)
        w2.astype(jnp.bfloat16),                        # (512, 256)
        b2.reshape(1, H2).astype(jnp.float32),          # (1, 256)
        w3.reshape(H2, OUT_DIM).T.astype(jnp.bfloat16), # (1, 256)
        b3.reshape(1, OUT_DIM).astype(jnp.float32),     # (1, 1)
    )


def discriminator_forward(z, prepped_params, max_tile_b=1024):
    """z: (B, 1, 28, 28) float32 (NCHW). Returns (B, 1) float32."""
    w1b, b1f, w2b, b2f, w3t, b3f = prepped_params
    B = z.shape[0]

    # Flatten exactly like torch's .view(B, -1); keep f32 (cast fused in-kernel).
    x = z.reshape(B, -1).astype(jnp.float32)            # (B, 784)

    tile_b, B_pad = _choose_tiling(B, max_tile_b)
    if B_pad != B:
        x = jnp.pad(x, ((0, B_pad - B), (0, 0)))
    num_tiles = B_pad // tile_b

    resident = lambda shape: pl.BlockSpec(shape, lambda i: (0, 0))

    out = pl.pallas_call(
        _discriminator_kernel,
        out_shape=jax.ShapeDtypeStruct((1, B_pad), jnp.float32),
        grid_spec=pltpu.PrefetchScalarGridSpec(
            num_scalar_prefetch=0,
            grid=(num_tiles,),
            in_specs=[
                pl.BlockSpec((tile_b, IN_DIM), lambda i: (i, 0)),   # x tile (f32)
                resident((IN_DIM, H1)), resident((1, H1)),          # W1, b1
                resident((H1, H2)),     resident((1, H2)),          # W2, b2
                resident((1, H2)),      resident((1, OUT_DIM)),     # W3^T, b3
            ],
            out_specs=pl.BlockSpec((1, tile_b), lambda i: (0, i)),  # lane-major row
        ),
        compiler_params=pltpu.CompilerParams(
            dimension_semantics=("parallel",),
            vmem_limit_bytes=32 << 20,
        ),
    )(x, w1b, b1f, w2b, b2f, w3t, b3f)

    return out[0, :B].reshape(B, OUT_DIM)


def init_params(key):
    """Deterministic init mimicking PyTorch Linear default (U[-1/sqrt(in), 1/sqrt(in)]).
    Weights are stored as (in_features, out_features)."""
    ks = jax.random.split(key, 6)

    def lin(kw, kb, fan_in, fan_out):
        bound = 1.0 / jnp.sqrt(fan_in)
        w = jax.random.uniform(kw, (fan_in, fan_out), jnp.float32, -bound, bound)
        b = jax.random.uniform(kb, (1, fan_out), jnp.float32, -bound, bound)
        return w, b

    w1, b1 = lin(ks[0], ks[1], IN_DIM, H1)
    w2, b2 = lin(ks[2], ks[3], H1, H2)
    w3, b3 = lin(ks[4], ks[5], H2, OUT_DIM)
    return (w1, b1, w2, b2, w3, b3)


def _reference_forward(z, params):
    """Pure f32 JAX reference (no bf16)."""
    w1, b1, w2, b2, w3, b3 = params
    x = z.reshape(z.shape[0], -1)
    h1 = x @ w1 + b1
    h1 = jnp.where(h1 > 0, h1, 0.2 * h1)
    h2 = h1 @ w2 + b2
    h2 = jnp.where(h2 > 0, h2, 0.2 * h2)
    return jax.nn.sigmoid(h2 @ w3 + b3)


if __name__ == "__main__":
    key = jax.random.PRNGKey(0)
    k_param, k_input = jax.random.split(key)

    params = init_params(k_param)
    prepped = preprocess_params(params)        # one-time weight prep
    z = jax.random.normal(k_input, (2, 1, 28, 28), dtype=jnp.float32)  # NCHW

    out = discriminator_forward(z, prepped)
    out = jax.block_until_ready(out)

    ref = _reference_forward(z, params)
    assert out.shape == (2, 1), out.shape
    # bf16 weights/activations on the MXU (f32 accumulation) -> relaxed
    # tolerance vs the pure-f32 reference (sigmoid output is in (0,1)).
    assert jnp.allclose(out, ref, atol=3e-2, rtol=0), (out, ref)

    print("KERNEL_OK")
</pallas_src>

<mosaic_0001>
module attributes {stable_mosaic.version = 11 : i64} {
  func.func @_discriminator_kernel(%arg0: i32, %arg1: memref<16x784xf32, #tpu.memory_space<vmem>>, %arg2: memref<784x512xbf16, #tpu.memory_space<vmem>>, %arg3: memref<1x512xf32, #tpu.memory_space<vmem>>, %arg4: memref<512x256xbf16, #tpu.memory_space<vmem>>, %arg5: memref<1x256xf32, #tpu.memory_space<vmem>>, %arg6: memref<1x256xbf16, #tpu.memory_space<vmem>>, %arg7: memref<1x1xf32, #tpu.memory_space<vmem>>, %arg8: memref<1x16xf32, #tpu.memory_space<vmem>>) attributes {dimension_semantics = [#tpu.dimension_semantics<parallel>], iteration_bounds = array<i64: 1>, scalar_prefetch = 0 : i64, scratch_operands = 0 : i64, tpu.core_type = #tpu.core_type<tc>, window_params = [{transform_indices = @transform_0, window_bounds = array<i64: 16, 784>}, {pipeline_mode = #tpu.pipeline_mode<synchronous>, transform_indices = @transform_1, window_bounds = array<i64: 784, 512>}, {pipeline_mode = #tpu.pipeline_mode<synchronous>, transform_indices = @transform_2, window_bounds = array<i64: 1, 512>}, {pipeline_mode = #tpu.pipeline_mode<synchronous>, transform_indices = @transform_3, window_bounds = array<i64: 512, 256>}, {pipeline_mode = #tpu.pipeline_mode<synchronous>, transform_indices = @transform_4, window_bounds = array<i64: 1, 256>}, {pipeline_mode = #tpu.pipeline_mode<synchronous>, transform_indices = @transform_5, window_bounds = array<i64: 1, 256>}, {pipeline_mode = #tpu.pipeline_mode<synchronous>, transform_indices = @transform_6, window_bounds = array<i64: 1, 1>}, {transform_indices = @transform_7, window_bounds = array<i64: 1, 16>}]} {
    %c0 = arith.constant 0 : index
    %c0_0 = arith.constant 0 : index
    %0 = vector.load %arg1[%c0, %c0_0] : memref<16x784xf32, #tpu.memory_space<vmem>>, vector<16x784xf32>
    %1 = arith.truncf %0 : vector<16x784xf32> to vector<16x784xbf16>
    %c0_1 = arith.constant 0 : index
    %c0_2 = arith.constant 0 : index
    %2 = vector.load %arg2[%c0_1, %c0_2] : memref<784x512xbf16, #tpu.memory_space<vmem>>, vector<784x512xbf16>
    %cst = arith.constant dense<0.000000e+00> : vector<16x512xf32>
    %3 = tpu.matmul %1, %2, %cst {dimension_numbers = #tpu.dot_dimension_numbers<[1], [0], [0], [1], [0, 0, 1, 1], [], []>} : vector<16x784xbf16>, vector<784x512xbf16>, vector<16x512xf32> -> vector<16x512xf32>
    %c0_3 = arith.constant 0 : index
    %c0_4 = arith.constant 0 : index
    %4 = vector.load %arg3[%c0_3, %c0_4] : memref<1x512xf32, #tpu.memory_space<vmem>>, vector<1x512xf32>
    %5 = vector.broadcast %4 : vector<1x512xf32> to vector<16x512xf32>
    %6 = arith.addf %3, %5 : vector<16x512xf32>
    %cst_5 = arith.constant 0.000000e+00 : f32
    %7 = vector.broadcast %cst_5 : f32 to vector<16x512xf32>
    %8 = arith.cmpf ogt, %6, %7 : vector<16x512xf32>
    %cst_6 = arith.constant 2.000000e-01 : f32
    %9 = vector.broadcast %cst_6 : f32 to vector<16x512xf32>
    %10 = arith.mulf %9, %6 : vector<16x512xf32>
    %11 = arith.select %8, %6, %10 : vector<16x512xi1>, vector<16x512xf32>
    %12 = arith.truncf %11 : vector<16x512xf32> to vector<16x512xbf16>
    %c0_7 = arith.constant 0 : index
    %c0_8 = arith.constant 0 : index
    %13 = vector.load %arg4[%c0_7, %c0_8] : memref<512x256xbf16, #tpu.memory_space<vmem>>, vector<512x256xbf16>
    %cst_9 = arith.constant dense<0.000000e+00> : vector<16x256xf32>
    %14 = tpu.matmul %12, %13, %cst_9 {dimension_numbers = #tpu.dot_dimension_numbers<[1], [0], [0], [1], [0, 0, 1, 1], [], []>} : vector<16x512xbf16>, vector<512x256xbf16>, vector<16x256xf32> -> vector<16x256xf32>
    %c0_10 = arith.constant 0 : index
    %c0_11 = arith.constant 0 : index
    %15 = vector.load %arg5[%c0_10, %c0_11] : memref<1x256xf32, #tpu.memory_space<vmem>>, vector<1x256xf32>
    %16 = vector.broadcast %15 : vector<1x256xf32> to vector<16x256xf32>
    %17 = arith.addf %14, %16 : vector<16x256xf32>
    %cst_12 = arith.constant 0.000000e+00 : f32
    %18 = vector.broadcast %cst_12 : f32 to vector<16x256xf32>
    %19 = arith.cmpf ogt, %17, %18 : vector<16x256xf32>
    %cst_13 = arith.constant 2.000000e-01 : f32
    %20 = vector.broadcast %cst_13 : f32 to vector<16x256xf32>
    %21 = arith.mulf %20, %17 : vector<16x256xf32>
    %22 = arith.select %19, %17, %21 : vector<16x256xi1>, vector<16x256xf32>
    %c0_14 = arith.constant 0 : index
    %c0_15 = arith.constant 0 : index
    %23 = vector.load %arg6[%c0_14, %c0_15] : memref<1x256xbf16, #tpu.memory_space<vmem>>, vector<1x256xbf16>
    %24 = arith.truncf %22 : vector<16x256xf32> to vector<16x256xbf16>
    %cst_16 = arith.constant dense<0.000000e+00> : vector<1x16xf32>
    %25 = tpu.matmul %23, %24, %cst_16 {dimension_numbers = #tpu.dot_dimension_numbers<[1], [1], [0], [0], [0, 0, 1, 0], [], []>} : vector<1x256xbf16>, vector<16x256xbf16>, vector<1x16xf32> -> vector<1x16xf32>
    %c0_17 = arith.constant 0 : index
    %c0_18 = arith.constant 0 : index
    %26 = vector.load %arg7[%c0_17, %c0_18] : memref<1x1xf32, #tpu.memory_space<vmem>>, vector<1x1xf32>
    %27 = vector.broadcast %26 : vector<1x1xf32> to vector<1x16xf32>
    %28 = arith.addf %25, %27 : vector<1x16xf32>
    %29 = arith.negf %28 : vector<1x16xf32>
    %30 = math.exp %29 : vector<1x16xf32>
    %cst_19 = arith.constant 1.000000e+00 : f32
    %31 = vector.broadcast %cst_19 : f32 to vector<1x16xf32>
    %32 = arith.addf %31, %30 : vector<1x16xf32>
    %33 = arith.divf %31, %32 : vector<1x16xf32>
    %c0_20 = arith.constant 0 : index
    %c0_21 = arith.constant 0 : index
    %34 = vector.load %arg8[%c0_20, %c0_21] : memref<1x16xf32, #tpu.memory_space<vmem>>, vector<1x16xf32>
    tpu.vector_store %arg8[%c0_20, %c0_21], %33 {strides = array<i32>} : memref<1x16xf32, #tpu.memory_space<vmem>>, vector<1x16xf32>,
    return
  }
  func.func @transform_0(%arg0: i32) -> (i32, i32) {
    %c0_i32 = arith.constant 0 : i32
    %c0_i32_0 = arith.constant 0 : i32
    return %arg0, %c0_i32 : i32, i32
  }
  func.func @transform_1(%arg0: i32) -> (i32, i32) {
    %c0_i32 = arith.constant 0 : i32
    %c0_i32_0 = arith.constant 0 : i32
    %c0_i32_1 = arith.constant 0 : i32
    return %c0_i32, %c0_i32_0 : i32, i32
  }
  func.func @transform_2(%arg0: i32) -> (i32, i32) {
    %c0_i32 = arith.constant 0 : i32
    %c0_i32_0 = arith.constant 0 : i32
    %c0_i32_1 = arith.constant 0 : i32
    return %c0_i32, %c0_i32_0 : i32, i32
  }
  func.func @transform_3(%arg0: i32) -> (i32, i32) {
    %c0_i32 = arith.constant 0 : i32
    %c0_i32_0 = arith.constant 0 : i32
    %c0_i32_1 = arith.constant 0 : i32
    return %c0_i32, %c0_i32_0 : i32, i32
  }
  func.func @transform_4(%arg0: i32) -> (i32, i32) {
    %c0_i32 = arith.constant 0 : i32
    %c0_i32_0 = arith.constant 0 : i32
    %c0_i32_1 = arith.constant 0 : i32
    return %c0_i32, %c0_i32_0 : i32, i32
  }
  func.func @transform_5(%arg0: i32) -> (i32, i32) {
    %c0_i32 = arith.constant 0 : i32
    %c0_i32_0 = arith.constant 0 : i32
    %c0_i32_1 = arith.constant 0 : i32
    return %c0_i32, %c0_i32_0 : i32, i32
  }
  func.func @transform_6(%arg0: i32) -> (i32, i32) {
    %c0_i32 = arith.constant 0 : i32
    %c0_i32_0 = arith.constant 0 : i32
    %c0_i32_1 = arith.constant 0 : i32
    return %c0_i32, %c0_i32_0 : i32, i32
  }
  func.func @transform_7(%arg0: i32) -> (i32, i32) {
    %c0_i32 = arith.constant 0 : i32
    %c0_i32_0 = arith.constant 0 : i32
    return %c0_i32, %arg0 : i32, i32
  }
}

</mosaic_0001>

<llo_original>
// kernel: tpu_custom_call.1
$region0: #{tpu_custom_call.1}
  #allocation0 [shape = 'u32[]', space=smem, size = 0x4, offset = 0x4, fixed_abs, tag = 'smem constant byte address 0x4 - core index']
  #allocation1 [shape = 'u32[72,128]{1,0:T(1,128)}', space=vmem, size = 0x9000, scoped, tag = 'internal scratch']
  #allocation2 [shape = 'f32[1,1]{1,0:T(1,128)S(1)}', space=vmem, size = 0x200, scoped, tag = 'scoped memory for tpu_custom_call.1']
  %s0 = inlined_call_operand.hbm [shape: f32[16,784], index: 0, kind: input, shape index: {}]
  %s1 = inlined_call_operand.hbm [shape: bf16[784,512], index: 1, kind: input, shape index: {}]
  %s2 = inlined_call_operand.hbm [shape: f32[1,512], index: 2, kind: input, shape index: {}]
  %s3 = inlined_call_operand.hbm [shape: bf16[512,256], index: 3, kind: input, shape index: {}]
  %s4 = inlined_call_operand.vmem [shape: f32[1,256], index: 4, kind: input, shape index: {}]
  %s5 = inlined_call_operand.vmem [shape: bf16[1,256], index: 5, kind: input, shape index: {}]
  %s6 = inlined_call_operand.<no memory space> [shape: f32[1,1], index: 6, kind: input, shape index: {}]
  %s7 = inlined_call_operand.hbm [shape: f32[1,16], index: 7, kind: output, shape index: {}]
  %s8 = sld [smem:[#allocation0]]
  $region54: #{tpu_custom_call.1} parent=0
    _
  %s10 = ssub.s32 1, %s8
  %s11 = scalar_select 0, %s10, %s8
  %v12 = vstv %s6
  %13 = vst [vmem:[#allocation2] sm:$0x1] %v12
  $region1: #{tpu_custom_call.1} parent=0
    #allocation3 [shape = 'u8[57344]{0}', space=vmem, size = 0xe000, scoped, tag = 'input window, operand 0, single buffered']
    #allocation4 [shape = 's32[1]{0}', space=sflag, size = 0x4, scoped, tag = 'scoped memory for tpu_custom_call.1']
    #allocation5 [shape = 's32[1]{0}', space=sflag, size = 0x4, scoped, tag = 'scoped memory for tpu_custom_call.1']
    #allocation6 [shape = 'u8[802816]{0}', space=vmem, size = 0xc4000, scoped, tag = 'input window, operand 1, single buffered']
    #allocation7 [shape = 's32[1]{0}', space=sflag, size = 0x4, scoped, tag = 'scoped memory for tpu_custom_call.1']
    #allocation8 [shape = 'u8[2048]{0}', space=vmem, size = 0x800, scoped, tag = 'input window, operand 2, single buffered']
    #allocation9 [shape = 'u8[262144]{0}', space=vmem, size = 0x40000, scoped, tag = 'input window, operand 3, single buffered']
    #allocation10 [shape = 's32[1]{0}', space=sflag, size = 0x4, scoped, tag = 'scoped memory for tpu_custom_call.1']
    #allocation11 [shape = 'u8[512]{0}', space=vmem, size = 0x400, scoped, tag = 'output window, operand 0, single buffered']
    %14 = vsyncpa [#allocation4], 0
    %15 = vsyncpa [#allocation7], 0
    %16 = vsyncpa [#allocation10], 0
    %17 = vsyncpa [#allocation5], 0
    // Predicated region
    $region2: #{tpu_custom_call.1} parent=1 // pred_check
      _
    $region3: #{tpu_custom_call.1} parent=1 // pred_check_branch
      %19 = sbr.rel (0) target = $region5
    $region4: #{tpu_custom_call.1} parent=1 // pred_region
      %21 = vsyncadd [#allocation4], 0
      %s22 = sshll.u32 %s0, 4
      %s23 = int_to_ptr.hbm [resolvable:$true] %s22
      %s24 = sshll.u32 [#allocation3], 4
      %s25 = int_to_ptr.vmem [resolvable:$true] %s24
      %30 = dma.hbm_to_vmem [thread:$0]  %s23, 1792, %s25, [#allocation4], 896, 896, 56
    $region5: #{tpu_custom_call.1} parent=1 // pred_fallthru
      _
    // Predicated region
    $region6: #{tpu_custom_call.1} parent=1 // pred_check
      _
    $region7: #{tpu_custom_call.1} parent=1 // pred_check_branch
      %32 = sbr.rel (0) target = $region9
    $region8: #{tpu_custom_call.1} parent=1 // pred_region
      %34 = vsyncadd [#allocation7], 0
      %s35 = sshll.u32 %s1, 4
      %s36 = int_to_ptr.hbm [resolvable:$true] %s35
      %s37 = sshll.u32 [#allocation6], 4
      %s38 = int_to_ptr.vmem [resolvable:$true] %s37
      %43 = dma.hbm_to_vmem [thread:$0]  %s36, 25088, %s38, [#allocation7], 256, 256, 16
    $region9: #{tpu_custom_call.1} parent=1 // pred_fallthru
      _
    // Predicated region
    $region10: #{tpu_custom_call.1} parent=1 // pred_check
      _
    $region11: #{tpu_custom_call.1} parent=1 // pred_check_branch
      %45 = sbr.rel (0) target = $region13
    $region12: #{tpu_custom_call.1} parent=1 // pred_region
      %47 = vsyncadd [#allocation7], 0
      %s49 = sshll.u32 %s2, 4
      %s50 = int_to_ptr.hbm [resolvable:$true] %s49
      %s51 = sshll.u32 [#allocation8], 4
      %s52 = int_to_ptr.vmem [resolvable:$true] %s51
      %54 = dma.hbm_to_vmem [thread:$0]  %s50, 64, %s52, [#allocation7]
    $region13: #{tpu_custom_call.1} parent=1 // pred_fallthru
      _
    // Predicated region
    $region14: #{tpu_custom_call.1} parent=1 // pred_check
      _
    $region15: #{tpu_custom_call.1} parent=1 // pred_check_branch
      %56 = sbr.rel (0) target = $region17
    $region16: #{tpu_custom_call.1} parent=1 // pred_region
      %58 = vsyncadd [#allocation10], 0
      %s59 = sshll.u32 %s3, 4
      %s60 = int_to_ptr.hbm [resolvable:$true] %s59
      %s61 = sshll.u32 [#allocation9], 4
      %s62 = int_to_ptr.vmem [resolvable:$true] %s61
      %67 = dma.hbm_to_vmem [thread:$0]  %s60, 8192, %s62, [#allocation10], 128, 128, 8
    $region17: #{tpu_custom_call.1} parent=1 // pred_fallthru
      _
    // Predicated region
    $region18: #{tpu_custom_call.1} parent=1 // pred_check
      _
    $region19: #{tpu_custom_call.1} parent=1 // pred_check_branch
      %69 = sbr.rel (0) target = $region21
    $region20: #{tpu_custom_call.1} parent=1 // pred_region
      _
    $region21: #{tpu_custom_call.1} parent=1 // pred_fallthru
      _
    // Predicated region
    $region22: #{tpu_custom_call.1} parent=1 // pred_check
      _
    $region23: #{tpu_custom_call.1} parent=1 // pred_check_branch
      %71 = sbr.rel (0) target = $region25
    $region24: #{tpu_custom_call.1} parent=1 // pred_region
      _
    $region25: #{tpu_custom_call.1} parent=1 // pred_fallthru
      _
    // Predicated region
    $region26: #{tpu_custom_call.1} parent=1 // pred_check
      _
    $region27: #{tpu_custom_call.1} parent=1 // pred_check_branch
      %73 = sbr.rel (0) target = $region29
    $region28: #{tpu_custom_call.1} parent=1 // pred_region
      _
    $region29: #{tpu_custom_call.1} parent=1 // pred_fallthru
      _
    // Predicated region
    $region30: #{tpu_custom_call.1} parent=1 // pred_check
      _
    $region31: #{tpu_custom_call.1} parent=1 // pred_check_branch
      %75 = sbr.rel (0) target = $region33
    $region32: #{tpu_custom_call.1} parent=1 // pred_region
      %77 = dma.done [#allocation4], 1792
    $region33: #{tpu_custom_call.1} parent=1 // pred_fallthru
      _
    // Predicated region
    $region34: #{tpu_custom_call.1} parent=1 // pred_check
      _
    $region35: #{tpu_custom_call.1} parent=1 // pred_check_branch
      %79 = sbr.rel (0) target = $region37
    $region36: #{tpu_custom_call.1} parent=1 // pred_region
      %81 = dma.done [#allocation7], 25088
    $region37: #{tpu_custom_call.1} parent=1 // pred_fallthru
      _
    // Predicated region
    $region38: #{tpu_custom_call.1} parent=1 // pred_check
      _
    $region39: #{tpu_custom_call.1} parent=1 // pred_check_branch
      %83 = sbr.rel (0) target = $region41
    $region40: #{tpu_custom_call.1} parent=1 // pred_region
      %85 = dma.done [#allocation7], 64
    $region41: #{tpu_custom_call.1} parent=1 // pred_fallthru
      _
    // Predicated region
    $region42: #{tpu_custom_call.1} parent=1 // pred_check
      _
    $region43: #{tpu_custom_call.1} parent=1 // pred_check_branch
      %87 = sbr.rel (0) target = $region45
    $region44: #{tpu_custom_call.1} parent=1 // pred_region
      %89 = dma.done [#allocation10], 8192
    $region45: #{tpu_custom_call.1} parent=1 // pred_fallthru
      _
    %v91 = vld [vmem:[#allocation3] sm:$0xff]
    %v92 = vld [vmem:[#allocation3 + $0x8] sm:$0xff]
    %v93 = vld [vmem:[#allocation3 + $0x10] sm:$0xff]
    %v94 = vld [vmem:[#allocation3 + $0x18] sm:$0xff]
    %v95 = vld [vmem:[#allocation3 + $0x20] sm:$0xff]
    %v96 = vld [vmem:[#allocation3 + $0x28] sm:$0xff]
    %v97 = vld [vmem:[#allocation3 + $0x30] sm:$0xff]
    %v98 = vld [vmem:[#allocation3 + $0x38] sm:$0xff]
    %v99 = vld [vmem:[#allocation3 + $0x40] sm:$0xff]
    %v100 = vld [vmem:[#allocation3 + $0x48] sm:$0xff]
    %v101 = vld [vmem:[#allocation3 + $0x50] sm:$0xff]
    %v102 = vld [vmem:[#allocation3 + $0x58] sm:$0xff]
    %v103 = vld [vmem:[#allocation3 + $0x60] sm:$0xff]
    %v104 = vld [vmem:[#allocation3 + $0x68] sm:$0xff]
    %v105 = vpack.c.bf16 %v98, %v91
    %v106 = vpack.c.bf16 %v99, %v92
    %v107 = vpack.c.bf16 %v100, %v93
    %v108 = vpack.c.bf16 %v101, %v94
    %v109 = vpack.c.bf16 %v102, %v95
    %v110 = vpack.c.bf16 %v103, %v96
    %v111 = vpack.c.bf16 %v104, %v97
    %v112 = vld [vmem:[#allocation6] sm:$0xff]
    %v113 = vld [vmem:[#allocation6 + $0x8] sm:$0xff]
    %v114 = vld [vmem:[#allocation6 + $0x10] sm:$0xff]
    %v115 = vld [vmem:[#allocation6 + $0x18] sm:$0xff]
    %v116 = vld [vmem:[#allocation6 + $0x20] sm:$0xff]
    %v117 = vld [vmem:[#allocation6 + $0x28] sm:$0xff]
    %v118 = vld [vmem:[#allocation6 + $0x30] sm:$0xff]
    %v119 = vld [vmem:[#allocation6 + $0x38] sm:$0xff]
    %v120 = vld [vmem:[#allocation6 + $0x40] sm:$0xff]
    %v121 = vld [vmem:[#allocation6 + $0x48] sm:$0xff]
    %v122 = vld [vmem:[#allocation6 + $0x50] sm:$0xff]
    %v123 = vld [vmem:[#allocation6 + $0x58] sm:$0xff]
    %v124 = vld [vmem:[#allocation6 + $0x60] sm:$0xff]
    %v125 = vld [vmem:[#allocation6 + $0x68] sm:$0xff]
    %v126 = vld [vmem:[#allocation6 + $0x70] sm:$0xff]
    %v127 = vld [vmem:[#allocation6 + $0x78] sm:$0xff]
    %v128 = vld [vmem:[#allocation6 + $0x80] sm:$0xff]
    %v129 = vld [vmem:[#allocation6 + $0x88] sm:$0xff]
    %v130 = vld [vmem:[#allocation6 + $0x90] sm:$0xff]
    %v131 = vld [vmem:[#allocation6 + $0x98] sm:$0xff]
    %v132 = vld [vmem:[#allocation6 + $0xa0] sm:$0xff]
    %v133 = vld [vmem:[#allocation6 + $0xa8] sm:$0xff]
    %v134 = vld [vmem:[#allocation6 + $0xb0] sm:$0xff]
    %v135 = vld [vmem:[#allocation6 + $0xb8] sm:$0xff]
    %v136 = vld [vmem:[#allocation6 + $0xc0] sm:$0xff]
    %v137 = vld [vmem:[#allocation6 + $0xc8] sm:$0xff]
    %v138 = vld [vmem:[#allocation6 + $0xd0] sm:$0xff]
    %v139 = vld [vmem:[#allocation6 + $0xd8] sm:$0xff]
    %v140 = vld [vmem:[#allocation6 + $0xe0] sm:$0xff]
    %v141 = vld [vmem:[#allocation6 + $0xe8] sm:$0xff]
    %v142 = vld [vmem:[#allocation6 + $0xf0] sm:$0xff]
    %v143 = vld [vmem:[#allocation6 + $0xf8] sm:$0xff]
    %v144 = vld [vmem:[#allocation6 + $0x100] sm:$0xff]
    %v145 = vld [vmem:[#allocation6 + $0x108] sm:$0xff]
    %v146 = vld [vmem:[#allocation6 + $0x110] sm:$0xff]
    %v147 = vld [vmem:[#allocation6 + $0x118] sm:$0xff]
    %v148 = vld [vmem:[#allocation6 + $0x120] sm:$0xff]
    %v149 = vld [vmem:[#allocation6 + $0x128] sm:$0xff]
    %v150 = vld [vmem:[#allocation6 + $0x130] sm:$0xff]
    %v151 = vld [vmem:[#allocation6 + $0x138] sm:$0xff]
    %v152 = vld [vmem:[#allocation6 + $0x140] sm:$0xff]
    %v153 = vld [vmem:[#allocation6 + $0x148] sm:$0xff]
    %v154 = vld [vmem:[#allocation6 + $0x150] sm:$0xff]
    %v155 = vld [vmem:[#allocation6 + $0x158] sm:$0xff]
    %v156 = vld [vmem:[#allocation6 + $0x160] sm:$0xff]
    %v157 = vld [vmem:[#allocation6 + $0x168] sm:$0xff]
    %v158 = vld [vmem:[#allocation6 + $0x170] sm:$0xff]
    %v159 = vld [vmem:[#allocation6 + $0x178] sm:$0xff]
    %v160 = vld [vmem:[#allocation6 + $0x180] sm:$0xff]
    %v161 = vld [vmem:[#allocation6 + $0x188] sm:$0xff]
    %v162 = vld [vmem:[#allocation6 + $0x190] sm:$0xff]
    %v163 = vld [vmem:[#allocation6 + $0x198] sm:$0xff]
    %v164 = vld [vmem:[#allocation6 + $0x1a0] sm:$0xff]
    %v165 = vld [vmem:[#allocation6 + $0x1a8] sm:$0xff]
    %v166 = vld [vmem:[#allocation6 + $0x1b0] sm:$0xff]
    %v167 = vld [vmem:[#allocation6 + $0x1b8] sm:$0xff]
    %v168 = vld [vmem:[#allocation6 + $0x1c0] sm:$0xff]
    %v169 = vld [vmem:[#allocation6 + $0x1c8] sm:$0xff]
    %v170 = vld [vmem:[#allocation6 + $0x1d0] sm:$0xff]
    %v171 = vld [vmem:[#allocation6 + $0x1d8] sm:$0xff]
    %v172 = vld [vmem:[#allocation6 + $0x1e0] sm:$0xff]
    %v173 = vld [vmem:[#allocation6 + $0x1e8] sm:$0xff]
    %v174 = vld [vmem:[#allocation6 + $0x1f0] sm:$0xff]
    %v175 = vld [vmem:[#allocation6 + $0x1f8] sm:$0xff]
    %v176 = vld [vmem:[#allocation6 + $0x200] sm:$0xff]
    %v177 = vld [vmem:[#allocation6 + $0x208] sm:$0xff]
    %v178 = vld [vmem:[#allocation6 + $0x210] sm:$0xff]
    %v179 = vld [vmem:[#allocation6 + $0x218] sm:$0xff]
    %v180 = vld [vmem:[#allocation6 + $0x220] sm:$0xff]
    %v181 = vld [vmem:[#allocation6 + $0x228] sm:$0xff]
    %v182 = vld [vmem:[#allocation6 + $0x230] sm:$0xff]
    %v183 = vld [vmem:[#allocation6 + $0x238] sm:$0xff]
    %v184 = vld [vmem:[#allocation6 + $0x240] sm:$0xff]
    %v185 = vld [vmem:[#allocation6 + $0x248] sm:$0xff]
    %v186 = vld [vmem:[#allocation6 + $0x250] sm:$0xff]
    %v187 = vld [vmem:[#allocation6 + $0x258] sm:$0xff]
    %v188 = vld [vmem:[#allocation6 + $0x260] sm:$0xff]
    %v189 = vld [vmem:[#allocation6 + $0x268] sm:$0xff]
    %v190 = vld [vmem:[#allocation6 + $0x270] sm:$0xff]
    %v191 = vld [vmem:[#allocation6 + $0x278] sm:$0xff]
    %v192 = vld [vmem:[#allocation6 + $0x280] sm:$0xff]
    %v193 = vld [vmem:[#allocation6 + $0x288] sm:$0xff]
    %v194 = vld [vmem:[#allocation6 + $0x290] sm:$0xff]
    %v195 = vld [vmem:[#allocation6 + $0x298] sm:$0xff]
    %v196 = vld [vmem:[#allocation6 + $0x2a0] sm:$0xff]
    %v197 = vld [vmem:[#allocation6 + $0x2a8] sm:$0xff]
    %v198 = vld [vmem:[#allocation6 + $0x2b0] sm:$0xff]
    %v199 = vld [vmem:[#allocation6 + $0x2b8] sm:$0xff]
    %v200 = vld [vmem:[#allocation6 + $0x2c0] sm:$0xff]
    %v201 = vld [vmem:[#allocation6 + $0x2c8] sm:$0xff]
    %v202 = vld [vmem:[#allocation6 + $0x2d0] sm:$0xff]
    %v203 = vld [vmem:[#allocation6 + $0x2d8] sm:$0xff]
    %v204 = vld [vmem:[#allocation6 + $0x2e0] sm:$0xff]
    %v205 = vld [vmem:[#allocation6 + $0x2e8] sm:$0xff]
    %v206 = vld [vmem:[#allocation6 + $0x2f0] sm:$0xff]
    %v207 = vld [vmem:[#allocation6 + $0x2f8] sm:$0xff]
    %v208 = vld [vmem:[#allocation6 + $0x300] sm:$0xff]
    %v209 = vld [vmem:[#allocation6 + $0x308] sm:$0xff]
    %v210 = vld [vmem:[#allocation6 + $0x310] sm:$0xff]
    %v211 = vld [vmem:[#allocation6 + $0x318] sm:$0xff]
    %v212 = vld [vmem:[#allocation6 + $0x320] sm:$0xff]
    %v213 = vld [vmem:[#allocation6 + $0x328] sm:$0xff]
    %v214 = vld [vmem:[#allocation6 + $0x330] sm:$0xff]
    %v215 = vld [vmem:[#allocation6 + $0x338] sm:$0xff]
    %v216 = vld [vmem:[#allocation6 + $0x340] sm:$0xff]
    %v217 = vld [vmem:[#allocation6 + $0x348] sm:$0xff]
    %v218 = vld [vmem:[#allocation6 + $0x350] sm:$0xff]
    %v219 = vld [vmem:[#allocation6 + $0x358] sm:$0xff]
    %v220 = vld [vmem:[#allocation6 + $0x360] sm:$0xff]
    %v221 = vld [vmem:[#allocation6 + $0x368] sm:$0xff]
    %v222 = vld [vmem:[#allocation6 + $0x370] sm:$0xff]
    %v223 = vld [vmem:[#allocation6 + $0x378] sm:$0xff]
    %v224 = vld [vmem:[#allocation6 + $0x380] sm:$0xff]
    %v225 = vld [vmem:[#allocation6 + $0x388] sm:$0xff]
    %v226 = vld [vmem:[#allocation6 + $0x390] sm:$0xff]
    %v227 = vld [vmem:[#allocation6 + $0x398] sm:$0xff]
    %v228 = vld [vmem:[#allocation6 + $0x3a0] sm:$0xff]
    %v229 = vld [vmem:[#allocation6 + $0x3a8] sm:$0xff]
    %v230 = vld [vmem:[#allocation6 + $0x3b0] sm:$0xff]
    %v231 = vld [vmem:[#allocation6 + $0x3b8] sm:$0xff]
    %v232 = vld [vmem:[#allocation6 + $0x3c0] sm:$0xff]
    %v233 = vld [vmem:[#allocation6 + $0x3c8] sm:$0xff]
    %v234 = vld [vmem:[#allocation6 + $0x3d0] sm:$0xff]
    %v235 = vld [vmem:[#allocation6 + $0x3d8] sm:$0xff]
    %v236 = vld [vmem:[#allocation6 + $0x3e0] sm:$0xff]
    %v237 = vld [vmem:[#allocation6 + $0x3e8] sm:$0xff]
    %v238 = vld [vmem:[#allocation6 + $0x3f0] sm:$0xff]
    %v239 = vld [vmem:[#allocation6 + $0x3f8] sm:$0xff]
    %v240 = vld [vmem:[#allocation6 + $0x400] sm:$0xff]
    %v241 = vld [vmem:[#allocation6 + $0x408] sm:$0xff]
    %v242 = vld [vmem:[#allocation6 + $0x410] sm:$0xff]
    %v243 = vld [vmem:[#allocation6 + $0x418] sm:$0xff]
    %v244 = vld [vmem:[#allocation6 + $0x420] sm:$0xff]
    %v245 = vld [vmem:[#allocation6 + $0x428] sm:$0xff]
    %v246 = vld [vmem:[#allocation6 + $0x430] sm:$0xff]
    %v247 = vld [vmem:[#allocation6 + $0x438] sm:$0xff]
    %v248 = vld [vmem:[#allocation6 + $0x440] sm:$0xff]
    %v249 = vld [vmem:[#allocation6 + $0x448] sm:$0xff]
    %v250 = vld [vmem:[#allocation6 + $0x450] sm:$0xff]
    %v251 = vld [vmem:[#allocation6 + $0x458] sm:$0xff]
    %v252 = vld [vmem:[#allocation6 + $0x460] sm:$0xff]
    %v253 = vld [vmem:[#allocation6 + $0x468] sm:$0xff]
    %v254 = vld [vmem:[#allocation6 + $0x470] sm:$0xff]
    %v255 = vld [vmem:[#allocation6 + $0x478] sm:$0xff]
    %v256 = vld [vmem:[#allocation6 + $0x480] sm:$0xff]
    %v257 = vld [vmem:[#allocation6 + $0x488] sm:$0xff]
    %v258 = vld [vmem:[#allocation6 + $0x490] sm:$0xff]
    %v259 = vld [vmem:[#allocation6 + $0x498] sm:$0xff]
    %v260 = vld [vmem:[#allocation6 + $0x4a0] sm:$0xff]
    %v261 = vld [vmem:[#allocation6 + $0x4a8] sm:$0xff]
    %v262 = vld [vmem:[#allocation6 + $0x4b0] sm:$0xff]
    %v263 = vld [vmem:[#allocation6 + $0x4b8] sm:$0xff]
    %v264 = vld [vmem:[#allocation6 + $0x4c0] sm:$0xff]
    %v265 = vld [vmem:[#allocation6 + $0x4c8] sm:$0xff]
    %v266 = vld [vmem:[#allocation6 + $0x4d0] sm:$0xff]
    %v267 = vld [vmem:[#allocation6 + $0x4d8] sm:$0xff]
    %v268 = vld [vmem:[#allocation6 + $0x4e0] sm:$0xff]
    %v269 = vld [vmem:[#allocation6 + $0x4e8] sm:$0xff]
    %v270 = vld [vmem:[#allocation6 + $0x4f0] sm:$0xff]
    %v271 = vld [vmem:[#allocation6 + $0x4f8] sm:$0xff]
    %v272 = vld [vmem:[#allocation6 + $0x500] sm:$0xff]
    %v273 = vld [vmem:[#allocation6 + $0x508] sm:$0xff]
    %v274 = vld [vmem:[#allocation6 + $0x510] sm:$0xff]
    %v275 = vld [vmem:[#allocation6 + $0x518] sm:$0xff]
    %v276 = vld [vmem:[#allocation6 + $0x520] sm:$0xff]
    %v277 = vld [vmem:[#allocation6 + $0x528] sm:$0xff]
    %v278 = vld [vmem:[#allocation6 + $0x530] sm:$0xff]
    %v279 = vld [vmem:[#allocation6 + $0x538] sm:$0xff]
    %v280 = vld [vmem:[#allocation6 + $0x540] sm:$0xff]
    %v281 = vld [vmem:[#allocation6 + $0x548] sm:$0xff]
    %v282 = vld [vmem:[#allocation6 + $0x550] sm:$0xff]
    %v283 = vld [vmem:[#allocation6 + $0x558] sm:$0xff]
    %v284 = vld [vmem:[#allocation6 + $0x560] sm:$0xff]
    %v285 = vld [vmem:[#allocation6 + $0x568] sm:$0xff]
    %v286 = vld [vmem:[#allocation6 + $0x570] sm:$0xff]
    %v287 = vld [vmem:[#allocation6 + $0x578] sm:$0xff]
    %v288 = vld [vmem:[#allocation6 + $0x580] sm:$0xff]
    %v289 = vld [vmem:[#allocation6 + $0x588] sm:$0xff]
    %v290 = vld [vmem:[#allocation6 + $0x590] sm:$0xff]
    %v291 = vld [vmem:[#allocation6 + $0x598] sm:$0xff]
    %v292 = vld [vmem:[#allocation6 + $0x5a0] sm:$0xff]
    %v293 = vld [vmem:[#allocation6 + $0x5a8] sm:$0xff]
    %v294 = vld [vmem:[#allocation6 + $0x5b0] sm:$0xff]
    %v295 = vld [vmem:[#allocation6 + $0x5b8] sm:$0xff]
    %v296 = vld [vmem:[#allocation6 + $0x5c0] sm:$0xff]
    %v297 = vld [vmem:[#allocation6 + $0x5c8] sm:$0xff]
    %v298 = vld [vmem:[#allocation6 + $0x5d0] sm:$0xff]
    %v299 = vld [vmem:[#allocation6 + $0x5d8] sm:$0xff]
    %v300 = vld [vmem:[#allocation6 + $0x5e0] sm:$0xff]
    %v301 = vld [vmem:[#allocation6 + $0x5e8] sm:$0xff]
    %v302 = vld [vmem:[#allocation6 + $0x5f0] sm:$0xff]
    %v303 = vld [vmem:[#allocation6 + $0x5f8] sm:$0xff]
    %v304 = vld [vmem:[#allocation6 + $0x600] sm:$0xff]
    %v305 = vld [vmem:[#allocation6 + $0x608] sm:$0xff]
    %v306 = vld [vmem:[#allocation6 + $0x610] sm:$0xff]
    %v307 = vld [vmem:[#allocation6 + $0x618] sm:$0xff]
    %v308 = vld [vmem:[#allocation8] sm:$0xf]
    %v310 = vperm.slane %v308, 0
    %v311 = vperm.slane %v308, 1
    %v312 = vperm.slane %v308, 2
    %v313 = vperm.slane %v308, 3
    %v514 = vunpack.c.l.b16 %v112
    %v515 = vunpack.c.h.b16 %v112
    %v516 = vunpack.c.l.b16 %v113
    %v517 = vunpack.c.h.b16 %v113
    %v518 = vunpack.c.l.b16 %v114
    %v519 = vunpack.c.h.b16 %v114
    %v520 = vunpack.c.l.b16 %v115
    %v521 = vunpack.c.h.b16 %v115
    %v522 = vunpack.c.l.b16 %v116
    %v523 = vunpack.c.h.b16 %v116
    %v524 = vunpack.c.l.b16 %v117
    %v525 = vunpack.c.h.b16 %v117
    %v526 = vunpack.c.l.b16 %v118
    %v527 = vunpack.c.h.b16 %v118
    %v528 = vunpack.c.l.b16 %v119
    %v529 = vunpack.c.h.b16 %v119
    %v530 = vunpack.c.l.b16 %v120
    %v531 = vunpack.c.h.b16 %v120
    %v532 = vunpack.c.l.b16 %v121
    %v533 = vunpack.c.h.b16 %v121
    %v534 = vunpack.c.l.b16 %v122
    %v535 = vunpack.c.h.b16 %v122
    %v536 = vunpack.c.l.b16 %v123
    %v537 = vunpack.c.h.b16 %v123
    %v538 = vunpack.c.l.b16 %v124
    %v539 = vunpack.c.h.b16 %v124
    %v540 = vunpack.c.l.b16 %v125
    %v541 = vunpack.c.h.b16 %v125
    %v542 = vunpack.c.l.b16 %v126
    %v543 = vunpack.c.h.b16 %v126
    %v544 = vunpack.c.l.b16 %v127
    %v545 = vunpack.c.h.b16 %v127
    %v546 = vunpack.c.l.b16 %v128
    %v547 = vunpack.c.h.b16 %v128
    %v548 = vunpack.c.l.b16 %v129
    %v549 = vunpack.c.h.b16 %v129
    %v550 = vunpack.c.l.b16 %v130
    %v551 = vunpack.c.h.b16 %v130
    %v552 = vunpack.c.l.b16 %v131
    %v553 = vunpack.c.h.b16 %v131
    %v554 = vunpack.c.l.b16 %v132
    %v555 = vunpack.c.h.b16 %v132
    %v556 = vunpack.c.l.b16 %v133
    %v557 = vunpack.c.h.b16 %v133
    %v558 = vunpack.c.l.b16 %v134
    %v559 = vunpack.c.h.b16 %v134
    %v560 = vunpack.c.l.b16 %v135
    %v561 = vunpack.c.h.b16 %v135
    %v562 = vunpack.c.l.b16 %v136
    %v563 = vunpack.c.h.b16 %v136
    %v564 = vunpack.c.l.b16 %v137
    %v565 = vunpack.c.h.b16 %v137
    %v566 = vunpack.c.l.b16 %v138
    %v567 = vunpack.c.h.b16 %v138
    %v568 = vunpack.c.l.b16 %v139
    %v569 = vunpack.c.h.b16 %v139
    %v570 = vunpack.c.l.b16 %v140
    %v571 = vunpack.c.h.b16 %v140
    %v572 = vunpack.c.l.b16 %v141
    %v573 = vunpack.c.h.b16 %v141
    %v574 = vunpack.c.l.b16 %v142
    %v575 = vunpack.c.h.b16 %v142
    %v576 = vunpack.c.l.b16 %v143
    %v577 = vunpack.c.h.b16 %v143
    %v578 = vunpack.c.l.b16 %v144
    %v579 = vunpack.c.h.b16 %v144
    %v580 = vunpack.c.l.b16 %v145
    %v581 = vunpack.c.h.b16 %v145
    %v582 = vunpack.c.l.b16 %v146
    %v583 = vunpack.c.h.b16 %v146
    %v584 = vunpack.c.l.b16 %v147
    %v585 = vunpack.c.h.b16 %v147
    %v586 = vunpack.c.l.b16 %v148
    %v587 = vunpack.c.h.b16 %v148
    %v588 = vunpack.c.l.b16 %v149
    %v589 = vunpack.c.h.b16 %v149
    %v590 = vunpack.c.l.b16 %v150
    %v591 = vunpack.c.h.b16 %v150
    %v592 = vunpack.c.l.b16 %v151
    %v593 = vunpack.c.h.b16 %v151
    %v594 = vunpack.c.l.b16 %v152
    %v595 = vunpack.c.h.b16 %v152
    %v596 = vunpack.c.l.b16 %v153
    %v597 = vunpack.c.h.b16 %v153
    %v598 = vunpack.c.l.b16 %v154
    %v599 = vunpack.c.h.b16 %v154
    %v600 = vunpack.c.l.b16 %v155
    %v601 = vunpack.c.h.b16 %v155
    %v602 = vunpack.c.l.b16 %v156
    %v603 = vunpack.c.h.b16 %v156
    %v604 = vunpack.c.l.b16 %v157
    %v605 = vunpack.c.h.b16 %v157
    %v606 = vunpack.c.l.b16 %v158
    %v607 = vunpack.c.h.b16 %v158
    %v608 = vunpack.c.l.b16 %v159
    %v609 = vunpack.c.h.b16 %v159
    %v610 = vunpack.c.l.b16 %v160
    %v611 = vunpack.c.h.b16 %v160
    %v612 = vunpack.c.l.b16 %v161
    %v613 = vunpack.c.h.b16 %v161
    %v614 = vunpack.c.l.b16 %v162
    %v615 = vunpack.c.h.b16 %v162
    %v616 = vunpack.c.l.b16 %v163
    %v617 = vunpack.c.h.b16 %v163
    %v618 = vunpack.c.l.b16 %v164
    %v619 = vunpack.c.h.b16 %v164
    %v620 = vunpack.c.l.b16 %v165
    %v621 = vunpack.c.h.b16 %v165
    %v622 = vunpack.c.l.b16 %v166
    %v623 = vunpack.c.h.b16 %v166
    %v624 = vunpack.c.l.b16 %v167
    %v625 = vunpack.c.h.b16 %v167
    %v626 = vunpack.c.l.b16 %v168
    %v627 = vunpack.c.h.b16 %v168
    %v628 = vunpack.c.l.b16 %v169
    %v629 = vunpack.c.h.b16 %v169
    %v630 = vunpack.c.l.b16 %v170
    %v631 = vunpack.c.h.b16 %v170
    %v632 = vunpack.c.l.b16 %v171
    %v633 = vunpack.c.h.b16 %v171
    %v634 = vunpack.c.l.b16 %v172
    %v635 = vunpack.c.h.b16 %v172
    %v636 = vunpack.c.l.b16 %v173
    %v637 = vunpack.c.h.b16 %v173
    %v638 = vunpack.c.l.b16 %v174
    %v639 = vunpack.c.h.b16 %v174
    %v640 = vunpack.c.l.b16 %v175
    %v641 = vunpack.c.h.b16 %v175
    %v642 = vunpack.c.l.b16 %v176
    %v643 = vunpack.c.h.b16 %v176
    %v644 = vunpack.c.l.b16 %v177
    %v645 = vunpack.c.h.b16 %v177
    %v646 = vunpack.c.l.b16 %v178
    %v647 = vunpack.c.h.b16 %v178
    %v648 = vunpack.c.l.b16 %v179
    %v649 = vunpack.c.h.b16 %v179
    %v650 = vunpack.c.l.b16 %v180
    %v651 = vunpack.c.h.b16 %v180
    %v652 = vunpack.c.l.b16 %v181
    %v653 = vunpack.c.h.b16 %v181
    %v654 = vunpack.c.l.b16 %v182
    %v655 = vunpack.c.h.b16 %v182
    %v656 = vunpack.c.l.b16 %v183
    %v657 = vunpack.c.h.b16 %v183
    %v658 = vunpack.c.l.b16 %v184
    %v659 = vunpack.c.h.b16 %v184
    %v660 = vunpack.c.l.b16 %v185
    %v661 = vunpack.c.h.b16 %v185
    %v662 = vunpack.c.l.b16 %v186
    %v663 = vunpack.c.h.b16 %v186
    %v664 = vunpack.c.l.b16 %v187
    %v665 = vunpack.c.h.b16 %v187
    %v666 = vunpack.c.l.b16 %v188
    %v667 = vunpack.c.h.b16 %v188
    %v668 = vunpack.c.l.b16 %v189
    %v669 = vunpack.c.h.b16 %v189
    %v670 = vunpack.c.l.b16 %v190
    %v671 = vunpack.c.h.b16 %v190
    %v672 = vunpack.c.l.b16 %v191
    %v673 = vunpack.c.h.b16 %v191
    %v674 = vunpack.c.l.b16 %v192
    %v675 = vunpack.c.h.b16 %v192
    %v676 = vunpack.c.l.b16 %v193
    %v677 = vunpack.c.h.b16 %v193
    %v678 = vunpack.c.l.b16 %v194
    %v679 = vunpack.c.h.b16 %v194
    %v680 = vunpack.c.l.b16 %v195
    %v681 = vunpack.c.h.b16 %v195
    %v682 = vunpack.c.l.b16 %v196
    %v683 = vunpack.c.h.b16 %v196
    %v684 = vunpack.c.l.b16 %v197
    %v685 = vunpack.c.h.b16 %v197
    %v686 = vunpack.c.l.b16 %v198
    %v687 = vunpack.c.h.b16 %v198
    %v688 = vunpack.c.l.b16 %v199
    %v689 = vunpack.c.h.b16 %v199
    %v690 = vunpack.c.l.b16 %v200
    %v691 = vunpack.c.h.b16 %v200
    %v692 = vunpack.c.l.b16 %v201
    %v693 = vunpack.c.h.b16 %v201
    %v694 = vunpack.c.l.b16 %v202
    %v695 = vunpack.c.h.b16 %v202
    %v696 = vunpack.c.l.b16 %v203
    %v697 = vunpack.c.h.b16 %v203
    %v698 = vunpack.c.l.b16 %v204
    %v699 = vunpack.c.h.b16 %v204
    %v700 = vunpack.c.l.b16 %v205
    %v701 = vunpack.c.h.b16 %v205
    %v702 = vunpack.c.l.b16 %v206
    %v703 = vunpack.c.h.b16 %v206
    %v704 = vunpack.c.l.b16 %v207
    %v705 = vunpack.c.h.b16 %v207
    %v706 = vunpack.c.l.b16 %v208
    %v707 = vunpack.c.h.b16 %v208
    %v708 = vunpack.c.l.b16 %v209
    %v709 = vunpack.c.h.b16 %v209
    %v710 = vunpack.c.l.b16 %v210
    %v711 = vunpack.c.h.b16 %v210
    %v712 = vunpack.c.l.b16 %v211
    %v713 = vunpack.c.h.b16 %v211
    %v714 = vunpack.c.l.b16 %v212
    %v715 = vunpack.c.h.b16 %v212
    %v716 = vunpack.c.l.b16 %v213
    %v717 = vunpack.c.h.b16 %v213
    %v718 = vunpack.c.l.b16 %v214
    %v719 = vunpack.c.h.b16 %v214
    %v720 = vunpack.c.l.b16 %v215
    %v721 = vunpack.c.h.b16 %v215
    %v722 = vunpack.c.l.b16 %v216
    %v723 = vunpack.c.h.b16 %v216
    %v724 = vunpack.c.l.b16 %v217
    %v725 = vunpack.c.h.b16 %v217
    %v726 = vunpack.c.l.b16 %v218
    %v727 = vunpack.c.h.b16 %v218
    %v728 = vunpack.c.l.b16 %v219
    %v729 = vunpack.c.h.b16 %v219
    %v730 = vunpack.c.l.b16 %v220
    %v731 = vunpack.c.h.b16 %v220
    %v732 = vunpack.c.l.b16 %v221
    %v733 = vunpack.c.h.b16 %v221
    %v734 = vunpack.c.l.b16 %v222
    %v735 = vunpack.c.h.b16 %v222
    %v736 = vunpack.c.l.b16 %v223
    %v737 = vunpack.c.h.b16 %v223
    %v738 = vunpack.c.l.b16 %v224
    %v739 = vunpack.c.h.b16 %v224
    %v740 = vunpack.c.l.b16 %v225
    %v741 = vunpack.c.h.b16 %v225
    %v742 = vunpack.c.l.b16 %v226
    %v743 = vunpack.c.h.b16 %v226
    %v744 = vunpack.c.l.b16 %v227
    %v745 = vunpack.c.h.b16 %v227
    %v746 = vunpack.c.l.b16 %v228
    %v747 = vunpack.c.h.b16 %v228
    %v748 = vunpack.c.l.b16 %v229
    %v749 = vunpack.c.h.b16 %v229
    %v750 = vunpack.c.l.b16 %v230
    %v751 = vunpack.c.h.b16 %v230
    %v752 = vunpack.c.l.b16 %v231
    %v753 = vunpack.c.h.b16 %v231
    %v754 = vunpack.c.l.b16 %v232
    %v755 = vunpack.c.h.b16 %v232
    %v756 = vunpack.c.l.b16 %v233
    %v757 = vunpack.c.h.b16 %v233
    %v758 = vunpack.c.l.b16 %v234
    %v759 = vunpack.c.h.b16 %v234
    %v760 = vunpack.c.l.b16 %v235
    %v761 = vunpack.c.h.b16 %v235
    %v762 = vunpack.c.l.b16 %v236
    %v763 = vunpack.c.h.b16 %v236
    %v764 = vunpack.c.l.b16 %v237
    %v765 = vunpack.c.h.b16 %v237
    %v766 = vunpack.c.l.b16 %v238
    %v767 = vunpack.c.h.b16 %v238
    %v768 = vunpack.c.l.b16 %v239
    %v769 = vunpack.c.h.b16 %v239
    %v770 = vunpack.c.l.b16 %v240
    %v771 = vunpack.c.h.b16 %v240
    %v772 = vunpack.c.l.b16 %v241
    %v773 = vunpack.c.h.b16 %v241
    %v774 = vunpack.c.l.b16 %v242
    %v775 = vunpack.c.h.b16 %v242
    %v776 = vunpack.c.l.b16 %v243
    %v777 = vunpack.c.h.b16 %v243
    %v778 = vunpack.c.l.b16 %v244
    %v779 = vunpack.c.h.b16 %v244
    %v780 = vunpack.c.l.b16 %v245
    %v781 = vunpack.c.h.b16 %v245
    %v782 = vunpack.c.l.b16 %v246
    %v783 = vunpack.c.h.b16 %v246
    %v784 = vunpack.c.l.b16 %v247
    %v785 = vunpack.c.h.b16 %v247
    %v786 = vunpack.c.l.b16 %v248
    %v787 = vunpack.c.h.b16 %v248
    %v788 = vunpack.c.l.b16 %v249
    %v789 = vunpack.c.h.b16 %v249
    %v790 = vunpack.c.l.b16 %v250
    %v791 = vunpack.c.h.b16 %v250
    %v792 = vunpack.c.l.b16 %v251
    %v793 = vunpack.c.h.b16 %v251
    %v794 = vunpack.c.l.b16 %v252
    %v795 = vunpack.c.h.b16 %v252
    %v796 = vunpack.c.l.b16 %v253
    %v797 = vunpack.c.h.b16 %v253
    %v798 = vunpack.c.l.b16 %v254
    %v799 = vunpack.c.h.b16 %v254
    %v800 = vunpack.c.l.b16 %v255
    %v801 = vunpack.c.h.b16 %v255
    %v802 = vunpack.c.l.b16 %v256
    %v803 = vunpack.c.h.b16 %v256
    %v804 = vunpack.c.l.b16 %v257
    %v805 = vunpack.c.h.b16 %v257
    %v806 = vunpack.c.l.b16 %v258
    %v807 = vunpack.c.h.b16 %v258
    %v808 = vunpack.c.l.b16 %v259
    %v809 = vunpack.c.h.b16 %v259
    %v810 = vunpack.c.l.b16 %v260
    %v811 = vunpack.c.h.b16 %v260
    %v812 = vunpack.c.l.b16 %v261
    %v813 = vunpack.c.h.b16 %v261
    %v814 = vunpack.c.l.b16 %v262
    %v815 = vunpack.c.h.b16 %v262
    %v816 = vunpack.c.l.b16 %v263
    %v817 = vunpack.c.h.b16 %v263
    %v818 = vunpack.c.l.b16 %v264
    %v819 = vunpack.c.h.b16 %v264
    %v820 = vunpack.c.l.b16 %v265
    %v821 = vunpack.c.h.b16 %v265
    %v822 = vunpack.c.l.b16 %v266
    %v823 = vunpack.c.h.b16 %v266
    %v824 = vunpack.c.l.b16 %v267
    %v825 = vunpack.c.h.b16 %v267
    %v826 = vunpack.c.l.b16 %v268
    %v827 = vunpack.c.h.b16 %v268
    %v828 = vunpack.c.l.b16 %v269
    %v829 = vunpack.c.h.b16 %v269
    %v830 = vunpack.c.l.b16 %v270
    %v831 = vunpack.c.h.b16 %v270
    %v832 = vunpack.c.l.b16 %v271
    %v833 = vunpack.c.h.b16 %v271
    %v834 = vunpack.c.l.b16 %v272
    %v835 = vunpack.c.h.b16 %v272
    %v836 = vunpack.c.l.b16 %v273
    %v837 = vunpack.c.h.b16 %v273
    %v838 = vunpack.c.l.b16 %v274
    %v839 = vunpack.c.h.b16 %v274
    %v840 = vunpack.c.l.b16 %v275
    %v841 = vunpack.c.h.b16 %v275
    %v842 = vunpack.c.l.b16 %v276
    %v843 = vunpack.c.h.b16 %v276
    %v844 = vunpack.c.l.b16 %v277
    %v845 = vunpack.c.h.b16 %v277
    %v846 = vunpack.c.l.b16 %v278
    %v847 = vunpack.c.h.b16 %v278
    %v848 = vunpack.c.l.b16 %v279
    %v849 = vunpack.c.h.b16 %v279
    %v850 = vunpack.c.l.b16 %v280
    %v851 = vunpack.c.h.b16 %v280
    %v852 = vunpack.c.l.b16 %v281
    %v853 = vunpack.c.h.b16 %v281
    %v854 = vunpack.c.l.b16 %v282
    %v855 = vunpack.c.h.b16 %v282
    %v856 = vunpack.c.l.b16 %v283
    %v857 = vunpack.c.h.b16 %v283
    %v858 = vunpack.c.l.b16 %v284
    %v859 = vunpack.c.h.b16 %v284
    %v860 = vunpack.c.l.b16 %v285
    %v861 = vunpack.c.h.b16 %v285
    %v862 = vunpack.c.l.b16 %v286
    %v863 = vunpack.c.h.b16 %v286
    %v864 = vunpack.c.l.b16 %v287
    %v865 = vunpack.c.h.b16 %v287
    %v866 = vunpack.c.l.b16 %v288
    %v867 = vunpack.c.h.b16 %v288
    %v868 = vunpack.c.l.b16 %v289
    %v869 = vunpack.c.h.b16 %v289
    %v870 = vunpack.c.l.b16 %v290
    %v871 = vunpack.c.h.b16 %v290
    %v872 = vunpack.c.l.b16 %v291
    %v873 = vunpack.c.h.b16 %v291
    %v874 = vunpack.c.l.b16 %v292
    %v875 = vunpack.c.h.b16 %v292
    %v876 = vunpack.c.l.b16 %v293
    %v877 = vunpack.c.h.b16 %v293
    %v878 = vunpack.c.l.b16 %v294
    %v879 = vunpack.c.h.b16 %v294
    %v880 = vunpack.c.l.b16 %v295
    %v881 = vunpack.c.h.b16 %v295
    %v882 = vunpack.c.l.b16 %v296
    %v883 = vunpack.c.h.b16 %v296
    %v884 = vunpack.c.l.b16 %v297
    %v885 = vunpack.c.h.b16 %v297
    %v886 = vunpack.c.l.b16 %v298
    %v887 = vunpack.c.h.b16 %v298
    %v888 = vunpack.c.l.b16 %v299
    %v889 = vunpack.c.h.b16 %v299
    %v890 = vunpack.c.l.b16 %v300
    %v891 = vunpack.c.h.b16 %v300
    %v892 = vunpack.c.l.b16 %v301
    %v893 = vunpack.c.h.b16 %v301
    %v894 = vunpack.c.l.b16 %v302
    %v895 = vunpack.c.h.b16 %v302
    %v896 = vunpack.c.l.b16 %v303
    %v897 = vunpack.c.h.b16 %v303
    %v898 = vunpack.c.l.b16 %v304
    %v899 = vunpack.c.h.b16 %v304
    %v900 = vunpack.c.l.b16 %v305
    %v901 = vunpack.c.h.b16 %v305
    %v902 = vunpack.c.l.b16 %v306
    %v903 = vunpack.c.h.b16 %v306
    %v904 = vunpack.c.l.b16 %v307
    %v905 = vunpack.c.h.b16 %v307
    %v906 = vpack.c.b16 %v518, %v514
    %v907 = vpack.c.b16 %v519, %v515
    %v908 = vpack.c.b16 %v520, %v516
    %v909 = vpack.c.b16 %v521, %v517
    %v910 = vpack.c.b16 %v526, %v522
    %v911 = vpack.c.b16 %v527, %v523
    %v912 = vpack.c.b16 %v528, %v524
    %v913 = vpack.c.b16 %v529, %v525
    %v914 = vpack.c.b16 %v534, %v530
    %v915 = vpack.c.b16 %v535, %v531
    %v916 = vpack.c.b16 %v536, %v532
    %v917 = vpack.c.b16 %v537, %v533
    %v918 = vpack.c.b16 %v542, %v538
    %v919 = vpack.c.b16 %v543, %v539
    %v920 = vpack.c.b16 %v544, %v540
    %v921 = vpack.c.b16 %v545, %v541
    %v922 = vpack.c.b16 %v550, %v546
    %v923 = vpack.c.b16 %v551, %v547
    %v924 = vpack.c.b16 %v552, %v548
    %v925 = vpack.c.b16 %v553, %v549
    %v926 = vpack.c.b16 %v558, %v554
    %v927 = vpack.c.b16 %v559, %v555
    %v928 = vpack.c.b16 %v560, %v556
    %v929 = vpack.c.b16 %v561, %v557
    %v930 = vpack.c.b16 %v566, %v562
    %v931 = vpack.c.b16 %v567, %v563
    %v932 = vpack.c.b16 %v568, %v564
    %v933 = vpack.c.b16 %v569, %v565
    %v934 = vpack.c.b16 %v574, %v570
    %v935 = vpack.c.b16 %v575, %v571
    %v936 = vpack.c.b16 %v576, %v572
    %v937 = vpack.c.b16 %v577, %v573
    %v938 = vpack.c.b16 %v582, %v578
    %v939 = vpack.c.b16 %v583, %v579
    %v940 = vpack.c.b16 %v584, %v580
    %v941 = vpack.c.b16 %v585, %v581
    %v942 = vpack.c.b16 %v590, %v586
    %v943 = vpack.c.b16 %v591, %v587
    %v944 = vpack.c.b16 %v592, %v588
    %v945 = vpack.c.b16 %v593, %v589
    %v946 = vpack.c.b16 %v598, %v594
    %v947 = vpack.c.b16 %v599, %v595
    %v948 = vpack.c.b16 %v600, %v596
    %v949 = vpack.c.b16 %v601, %v597
    %v950 = vpack.c.b16 %v606, %v602
    %v951 = vpack.c.b16 %v607, %v603
    %v952 = vpack.c.b16 %v608, %v604
    %v953 = vpack.c.b16 %v609, %v605
    %v954 = vpack.c.b16 %v614, %v610
    %v955 = vpack.c.b16 %v615, %v611
    %v956 = vpack.c.b16 %v616, %v612
    %v957 = vpack.c.b16 %v617, %v613
    %v958 = vpack.c.b16 %v622, %v618
    %v959 = vpack.c.b16 %v623, %v619
    %v960 = vpack.c.b16 %v624, %v620
    %v961 = vpack.c.b16 %v625, %v621
    %v962 = vpack.c.b16 %v630, %v626
    %v963 = vpack.c.b16 %v631, %v627
    %v964 = vpack.c.b16 %v632, %v628
    %v965 = vpack.c.b16 %v633, %v629
    %v966 = vpack.c.b16 %v638, %v634
    %v967 = vpack.c.b16 %v639, %v635
    %v968 = vpack.c.b16 %v640, %v636
    %v969 = vpack.c.b16 %v641, %v637
    %v970 = vpack.c.b16 %v646, %v642
    %v971 = vpack.c.b16 %v647, %v643
    %v972 = vpack.c.b16 %v648, %v644
    %v973 = vpack.c.b16 %v649, %v645
    %v974 = vpack.c.b16 %v654, %v650
    %v975 = vpack.c.b16 %v655, %v651
    %v976 = vpack.c.b16 %v656, %v652
    %v977 = vpack.c.b16 %v657, %v653
    %v978 = vpack.c.b16 %v662, %v658
    %v979 = vpack.c.b16 %v663, %v659
    %v980 = vpack.c.b16 %v664, %v660
    %v981 = vpack.c.b16 %v665, %v661
    %v982 = vpack.c.b16 %v670, %v666
    %v983 = vpack.c.b16 %v671, %v667
    %v984 = vpack.c.b16 %v672, %v668
    %v985 = vpack.c.b16 %v673, %v669
    %v986 = vpack.c.b16 %v678, %v674
    %v987 = vpack.c.b16 %v679, %v675
    %v988 = vpack.c.b16 %v680, %v676
    %v989 = vpack.c.b16 %v681, %v677
    %v990 = vpack.c.b16 %v686, %v682
    %v991 = vpack.c.b16 %v687, %v683
    %v992 = vpack.c.b16 %v688, %v684
    %v993 = vpack.c.b16 %v689, %v685
    %v994 = vpack.c.b16 %v694, %v690
    %v995 = vpack.c.b16 %v695, %v691
    %v996 = vpack.c.b16 %v696, %v692
    %v997 = vpack.c.b16 %v697, %v693
    %v998 = vpack.c.b16 %v702, %v698
    %v999 = vpack.c.b16 %v703, %v699
    %v1000 = vpack.c.b16 %v704, %v700
    %v1001 = vpack.c.b16 %v705, %v701
    %v1002 = vpack.c.b16 %v710, %v706
    %v1003 = vpack.c.b16 %v711, %v707
    %v1004 = vpack.c.b16 %v712, %v708
    %v1005 = vpack.c.b16 %v713, %v709
    %v1006 = vpack.c.b16 %v718, %v714
    %v1007 = vpack.c.b16 %v719, %v715
    %v1008 = vpack.c.b16 %v720, %v716
    %v1009 = vpack.c.b16 %v721, %v717
    %v1010 = vpack.c.b16 %v726, %v722
    %v1011 = vpack.c.b16 %v727, %v723
    %v1012 = vpack.c.b16 %v728, %v724
    %v1013 = vpack.c.b16 %v729, %v725
    %v1014 = vpack.c.b16 %v734, %v730
    %v1015 = vpack.c.b16 %v735, %v731
    %v1016 = vpack.c.b16 %v736, %v732
    %v1017 = vpack.c.b16 %v737, %v733
    %v1018 = vpack.c.b16 %v742, %v738
    %v1019 = vpack.c.b16 %v743, %v739
    %v1020 = vpack.c.b16 %v744, %v740
    %v1021 = vpack.c.b16 %v745, %v741
    %v1022 = vpack.c.b16 %v750, %v746
    %v1023 = vpack.c.b16 %v751, %v747
    %v1024 = vpack.c.b16 %v752, %v748
    %v1025 = vpack.c.b16 %v753, %v749
    %v1026 = vpack.c.b16 %v758, %v754
    %v1027 = vpack.c.b16 %v759, %v755
    %v1028 = vpack.c.b16 %v760, %v756
    %v1029 = vpack.c.b16 %v761, %v757
    %v1030 = vpack.c.b16 %v766, %v762
    %v1031 = vpack.c.b16 %v767, %v763
    %v1032 = vpack.c.b16 %v768, %v764
    %v1033 = vpack.c.b16 %v769, %v765
    %v1034 = vpack.c.b16 %v774, %v770
    %v1035 = vpack.c.b16 %v775, %v771
    %v1036 = vpack.c.b16 %v776, %v772
    %v1037 = vpack.c.b16 %v777, %v773
    %v1038 = vpack.c.b16 %v782, %v778
    %v1039 = vpack.c.b16 %v783, %v779
    %v1040 = vpack.c.b16 %v784, %v780
    %v1041 = vpack.c.b16 %v785, %v781
    %v1042 = vpack.c.b16 %v790, %v786
    %v1043 = vpack.c.b16 %v791, %v787
    %v1044 = vpack.c.b16 %v792, %v788
    %v1045 = vpack.c.b16 %v793, %v789
    %v1046 = vpack.c.b16 %v798, %v794
    %v1047 = vpack.c.b16 %v799, %v795
    %v1048 = vpack.c.b16 %v800, %v796
    %v1049 = vpack.c.b16 %v801, %v797
    %v1050 = vpack.c.b16 %v806, %v802
    %v1051 = vpack.c.b16 %v807, %v803
    %v1052 = vpack.c.b16 %v808, %v804
    %v1053 = vpack.c.b16 %v809, %v805
    %v1054 = vpack.c.b16 %v814, %v810
    %v1055 = vpack.c.b16 %v815, %v811
    %v1056 = vpack.c.b16 %v816, %v812
    %v1057 = vpack.c.b16 %v817, %v813
    %v1058 = vpack.c.b16 %v822, %v818
    %v1059 = vpack.c.b16 %v823, %v819
    %v1060 = vpack.c.b16 %v824, %v820
    %v1061 = vpack.c.b16 %v825, %v821
    %v1062 = vpack.c.b16 %v830, %v826
    %v1063 = vpack.c.b16 %v831, %v827
    %v1064 = vpack.c.b16 %v832, %v828
    %v1065 = vpack.c.b16 %v833, %v829
    %v1066 = vpack.c.b16 %v838, %v834
    %v1067 = vpack.c.b16 %v839, %v835
    %v1068 = vpack.c.b16 %v840, %v836
    %v1069 = vpack.c.b16 %v841, %v837
    %v1070 = vpack.c.b16 %v846, %v842
    %v1071 = vpack.c.b16 %v847, %v843
    %v1072 = vpack.c.b16 %v848, %v844
    %v1073 = vpack.c.b16 %v849, %v845
    %v1074 = vpack.c.b16 %v854, %v850
    %v1075 = vpack.c.b16 %v855, %v851
    %v1076 = vpack.c.b16 %v856, %v852
    %v1077 = vpack.c.b16 %v857, %v853
    %v1078 = vpack.c.b16 %v862, %v858
    %v1079 = vpack.c.b16 %v863, %v859
    %v1080 = vpack.c.b16 %v864, %v860
    %v1081 = vpack.c.b16 %v865, %v861
    %v1082 = vpack.c.b16 %v870, %v866
    %v1083 = vpack.c.b16 %v871, %v867
    %v1084 = vpack.c.b16 %v872, %v868
    %v1085 = vpack.c.b16 %v873, %v869
    %v1086 = vpack.c.b16 %v878, %v874
    %v1087 = vpack.c.b16 %v879, %v875
    %v1088 = vpack.c.b16 %v880, %v876
    %v1089 = vpack.c.b16 %v881, %v877
    %v1090 = vpack.c.b16 %v886, %v882
    %v1091 = vpack.c.b16 %v887, %v883
    %v1092 = vpack.c.b16 %v888, %v884
    %v1093 = vpack.c.b16 %v889, %v885
    %v1094 = vpack.c.b16 %v894, %v890
    %v1095 = vpack.c.b16 %v895, %v891
    %v1096 = vpack.c.b16 %v896, %v892
    %v1097 = vpack.c.b16 %v897, %v893
    %v1098 = vpack.c.b16 %v902, %v898
    %v1099 = vpack.c.b16 %v903, %v899
    %v1100 = vpack.c.b16 %v904, %v900
    %v1101 = vpack.c.b16 %v905, %v901
    %vm1298 = vcmask 130048
    %v1300 = vsel %vm1298, %v111, 0
    %1302 = vmatpush.bf16.msra.mxu0 %v934
    %1303 = vmatpush.bf16.msra.mxu0 %v930
    %1304 = vmatpush.bf16.msra.mxu0 %v926
    %1305 = vmatpush.bf16.msra.mxu0 %v922
    %1306 = vmatpush.bf16.msra.mxu0 %v918
    %1307 = vmatpush.bf16.msra.mxu0 %v914
    %1308 = vmatpush.bf16.msra.mxu0 %v910
    %1309 = vmatpush.bf16.msra.mxu0 %v906
    %1310 = vmatmul.bf16.gmra.mxu0 %v105
    %v1311 = vpop.f32.mrf.mxu0
    %v1312 = vadd.f32 %v310, %v1311
    %v1313 = vpop.f32.mrf.mxu0
    %v1314 = vadd.f32 %v310, %v1313
    %1315 = vdwg.mxu0
    %1316 = vmatpush.bf16.msra.mxu0 %v966
    %1317 = vmatpush.bf16.msra.mxu0 %v962
    %1318 = vmatpush.bf16.msra.mxu0 %v958
    %1319 = vmatpush.bf16.msra.mxu0 %v954
    %1320 = vmatpush.bf16.msra.mxu0 %v950
    %1321 = vmatpush.bf16.msra.mxu0 %v946
    %1322 = vmatpush.bf16.msra.mxu0 %v942
    %1323 = vmatpush.bf16.msra.mxu0 %v938
    %1324 = vmatmul.bf16.gmra.mxu0 %v106
    %v1325 = vpop.f32.mrf.mxu0
    %v1326 = vadd.f32 %v1312, %v1325
    %v1327 = vpop.f32.mrf.mxu0
    %v1328 = vadd.f32 %v1314, %v1327
    %1329 = vdwg.mxu0
    %1330 = vmatpush.bf16.msra.mxu0 %v998
    %1331 = vmatpush.bf16.msra.mxu0 %v994
    %1332 = vmatpush.bf16.msra.mxu0 %v990
    %1333 = vmatpush.bf16.msra.mxu0 %v986
    %1334 = vmatpush.bf16.msra.mxu0 %v982
    %1335 = vmatpush.bf16.msra.mxu0 %v978
    %1336 = vmatpush.bf16.msra.mxu0 %v974
    %1337 = vmatpush.bf16.msra.mxu0 %v970
    %1338 = vmatmul.bf16.gmra.mxu0 %v107
    %v1339 = vpop.f32.mrf.mxu0
    %v1340 = vadd.f32 %v1326, %v1339
    %v1341 = vpop.f32.mrf.mxu0
    %v1342 = vadd.f32 %v1328, %v1341
    %1343 = vdwg.mxu0
    %1344 = vmatpush.bf16.msra.mxu0 %v1030
    %1345 = vmatpush.bf16.msra.mxu0 %v1026
    %1346 = vmatpush.bf16.msra.mxu0 %v1022
    %1347 = vmatpush.bf16.msra.mxu0 %v1018
    %1348 = vmatpush.bf16.msra.mxu0 %v1014
    %1349 = vmatpush.bf16.msra.mxu0 %v1010
    %1350 = vmatpush.bf16.msra.mxu0 %v1006
    %1351 = vmatpush.bf16.msra.mxu0 %v1002
    %1352 = vmatmul.bf16.gmra.mxu0 %v108
    %v1353 = vpop.f32.mrf.mxu0
    %v1354 = vadd.f32 %v1340, %v1353
    %v1355 = vpop.f32.mrf.mxu0
    %v1356 = vadd.f32 %v1342, %v1355
    %1357 = vdwg.mxu0
    %1358 = vmatpush.bf16.msra.mxu0 %v1062
    %1359 = vmatpush.bf16.msra.mxu0 %v1058
    %1360 = vmatpush.bf16.msra.mxu0 %v1054
    %1361 = vmatpush.bf16.msra.mxu0 %v1050
    %1362 = vmatpush.bf16.msra.mxu0 %v1046
    %1363 = vmatpush.bf16.msra.mxu0 %v1042
    %1364 = vmatpush.bf16.msra.mxu0 %v1038
    %1365 = vmatpush.bf16.msra.mxu0 %v1034
    %1366 = vmatmul.bf16.gmra.mxu0 %v109
    %v1367 = vpop.f32.mrf.mxu0
    %v1368 = vadd.f32 %v1354, %v1367
    %v1369 = vpop.f32.mrf.mxu0
    %v1370 = vadd.f32 %v1356, %v1369
    %1371 = vdwg.mxu0
    %1372 = vmatpush.bf16.msra.mxu0 %v1094
    %1373 = vmatpush.bf16.msra.mxu0 %v1090
    %1374 = vmatpush.bf16.msra.mxu0 %v1086
    %1375 = vmatpush.bf16.msra.mxu0 %v1082
    %1376 = vmatpush.bf16.msra.mxu0 %v1078
    %1377 = vmatpush.bf16.msra.mxu0 %v1074
    %1378 = vmatpush.bf16.msra.mxu0 %v1070
    %1379 = vmatpush.bf16.msra.mxu0 %v1066
    %1380 = vmatmul.bf16.gmra.mxu0 %v110
    %v1381 = vpop.f32.mrf.mxu0
    %v1382 = vadd.f32 %v1368, %v1381
    %v1383 = vpop.f32.mrf.mxu0
    %v1384 = vadd.f32 %v1370, %v1383
    %1385 = vdwg.mxu0
    %1386 = vmatpush.bf16.msra.mxu0 0
    %1387 = vmatpush.bf16.msra.mxu0 0
    %1388 = vmatpush.bf16.msra.mxu0 0
    %1389 = vmatpush.bf16.msra.mxu0 0
    %1390 = vmatpush.bf16.msra.mxu0 0
    %1391 = vmatpush.bf16.msra.mxu0 0
    %1392 = vmatpush.bf16.msra.mxu0 0
    %1393 = vmatpush.bf16.msra.mxu0 %v1098
    %1394 = vmatmul.bf16.gmra.mxu0 %v1300
    %v1395 = vpop.f32.mrf.mxu0
    %v1396 = vadd.f32 %v1382, %v1395
    %v1397 = vpop.f32.mrf.mxu0
    %v1398 = vadd.f32 %v1384, %v1397
    %1399 = vdwg.mxu0
    %1400 = vmatpush.bf16.msra.mxu0 %v935
    %1401 = vmatpush.bf16.msra.mxu0 %v931
    %1402 = vmatpush.bf16.msra.mxu0 %v927
    %1403 = vmatpush.bf16.msra.mxu0 %v923
    %1404 = vmatpush.bf16.msra.mxu0 %v919
    %1405 = vmatpush.bf16.msra.mxu0 %v915
    %1406 = vmatpush.bf16.msra.mxu0 %v911
    %1407 = vmatpush.bf16.msra.mxu0 %v907
    %1408 = vmatmul.bf16.gmra.mxu0 %v105
    %v1409 = vpop.f32.mrf.mxu0
    %v1410 = vadd.f32 %v311, %v1409
    %v1411 = vpop.f32.mrf.mxu0
    %v1412 = vadd.f32 %v311, %v1411
    %1413 = vdwg.mxu0
    %1414 = vmatpush.bf16.msra.mxu0 %v967
    %1415 = vmatpush.bf16.msra.mxu0 %v963
    %1416 = vmatpush.bf16.msra.mxu0 %v959
    %1417 = vmatpush.bf16.msra.mxu0 %v955
    %1418 = vmatpush.bf16.msra.mxu0 %v951
    %1419 = vmatpush.bf16.msra.mxu0 %v947
    %1420 = vmatpush.bf16.msra.mxu0 %v943
    %1421 = vmatpush.bf16.msra.mxu0 %v939
    %1422 = vmatmul.bf16.gmra.mxu0 %v106
    %v1423 = vpop.f32.mrf.mxu0
    %v1424 = vadd.f32 %v1410, %v1423
    %v1425 = vpop.f32.mrf.mxu0
    %v1426 = vadd.f32 %v1412, %v1425
    %1427 = vdwg.mxu0
    %1428 = vmatpush.bf16.msra.mxu0 %v999
    %1429 = vmatpush.bf16.msra.mxu0 %v995
    %1430 = vmatpush.bf16.msra.mxu0 %v991
    %1431 = vmatpush.bf16.msra.mxu0 %v987
    %1432 = vmatpush.bf16.msra.mxu0 %v983
    %1433 = vmatpush.bf16.msra.mxu0 %v979
    %1434 = vmatpush.bf16.msra.mxu0 %v975
    %1435 = vmatpush.bf16.msra.mxu0 %v971
    %1436 = vmatmul.bf16.gmra.mxu0 %v107
    %v1437 = vpop.f32.mrf.mxu0
    %v1438 = vadd.f32 %v1424, %v1437
    %v1439 = vpop.f32.mrf.mxu0
    %v1440 = vadd.f32 %v1426, %v1439
    %1441 = vdwg.mxu0
    %1442 = vmatpush.bf16.msra.mxu0 %v1031
    %1443 = vmatpush.bf16.msra.mxu0 %v1027
    %1444 = vmatpush.bf16.msra.mxu0 %v1023
    %1445 = vmatpush.bf16.msra.mxu0 %v1019
    %1446 = vmatpush.bf16.msra.mxu0 %v1015
    %1447 = vmatpush.bf16.msra.mxu0 %v1011
    %1448 = vmatpush.bf16.msra.mxu0 %v1007
    %1449 = vmatpush.bf16.msra.mxu0 %v1003
    %1450 = vmatmul.bf16.gmra.mxu0 %v108
    %v1451 = vpop.f32.mrf.mxu0
    %v1452 = vadd.f32 %v1438, %v1451
    %v1453 = vpop.f32.mrf.mxu0
    %v1454 = vadd.f32 %v1440, %v1453
    %1455 = vdwg.mxu0
    %1456 = vmatpush.bf16.msra.mxu0 %v1063
    %1457 = vmatpush.bf16.msra.mxu0 %v1059
    %1458 = vmatpush.bf16.msra.mxu0 %v1055
    %1459 = vmatpush.bf16.msra.mxu0 %v1051
    %1460 = vmatpush.bf16.msra.mxu0 %v1047
    %1461 = vmatpush.bf16.msra.mxu0 %v1043
    %1462 = vmatpush.bf16.msra.mxu0 %v1039
    %1463 = vmatpush.bf16.msra.mxu0 %v1035
    %1464 = vmatmul.bf16.gmra.mxu0 %v109
    %v1465 = vpop.f32.mrf.mxu0
    %v1466 = vadd.f32 %v1452, %v1465
    %v1467 = vpop.f32.mrf.mxu0
    %v1468 = vadd.f32 %v1454, %v1467
    %1469 = vdwg.mxu0
    %1470 = vmatpush.bf16.msra.mxu0 %v1095
    %1471 = vmatpush.bf16.msra.mxu0 %v1091
    %1472 = vmatpush.bf16.msra.mxu0 %v1087
    %1473 = vmatpush.bf16.msra.mxu0 %v1083
    %1474 = vmatpush.bf16.msra.mxu0 %v1079
    %1475 = vmatpush.bf16.msra.mxu0 %v1075
    %1476 = vmatpush.bf16.msra.mxu0 %v1071
    %1477 = vmatpush.bf16.msra.mxu0 %v1067
    %1478 = vmatmul.bf16.gmra.mxu0 %v110
    %v1479 = vpop.f32.mrf.mxu0
    %v1480 = vadd.f32 %v1466, %v1479
    %v1481 = vpop.f32.mrf.mxu0
    %v1482 = vadd.f32 %v1468, %v1481
    %1483 = vdwg.mxu0
    %1484 = vmatpush.bf16.msra.mxu0 0
    %1485 = vmatpush.bf16.msra.mxu0 0
    %1486 = vmatpush.bf16.msra.mxu0 0
    %1487 = vmatpush.bf16.msra.mxu0 0
    %1488 = vmatpush.bf16.msra.mxu0 0
    %1489 = vmatpush.bf16.msra.mxu0 0
    %1490 = vmatpush.bf16.msra.mxu0 0
    %1491 = vmatpush.bf16.msra.mxu0 %v1099
    %1492 = vmatmul.bf16.gmra.mxu0 %v1300
    %v1493 = vpop.f32.mrf.mxu0
    %v1494 = vadd.f32 %v1480, %v1493
    %v1495 = vpop.f32.mrf.mxu0
    %v1496 = vadd.f32 %v1482, %v1495
    %1497 = vdwg.mxu0
    %1498 = vmatpush.bf16.msra.mxu0 %v936
    %1499 = vmatpush.bf16.msra.mxu0 %v932
    %1500 = vmatpush.bf16.msra.mxu0 %v928
    %1501 = vmatpush.bf16.msra.mxu0 %v924
    %1502 = vmatpush.bf16.msra.mxu0 %v920
    %1503 = vmatpush.bf16.msra.mxu0 %v916
    %1504 = vmatpush.bf16.msra.mxu0 %v912
    %1505 = vmatpush.bf16.msra.mxu0 %v908
    %1506 = vmatmul.bf16.gmra.mxu0 %v105
    %v1507 = vpop.f32.mrf.mxu0
    %v1508 = vadd.f32 %v312, %v1507
    %v1509 = vpop.f32.mrf.mxu0
    %v1510 = vadd.f32 %v312, %v1509
    %1511 = vdwg.mxu0
    %1512 = vmatpush.bf16.msra.mxu0 %v968
    %1513 = vmatpush.bf16.msra.mxu0 %v964
    %1514 = vmatpush.bf16.msra.mxu0 %v960
    %1515 = vmatpush.bf16.msra.mxu0 %v956
    %1516 = vmatpush.bf16.msra.mxu0 %v952
    %1517 = vmatpush.bf16.msra.mxu0 %v948
    %1518 = vmatpush.bf16.msra.mxu0 %v944
    %1519 = vmatpush.bf16.msra.mxu0 %v940
    %1520 = vmatmul.bf16.gmra.mxu0 %v106
    %v1521 = vpop.f32.mrf.mxu0
    %v1522 = vadd.f32 %v1508, %v1521
    %v1523 = vpop.f32.mrf.mxu0
    %v1524 = vadd.f32 %v1510, %v1523
    %1525 = vdwg.mxu0
    %1526 = vmatpush.bf16.msra.mxu0 %v1000
    %1527 = vmatpush.bf16.msra.mxu0 %v996
    %1528 = vmatpush.bf16.msra.mxu0 %v992
    %1529 = vmatpush.bf16.msra.mxu0 %v988
    %1530 = vmatpush.bf16.msra.mxu0 %v984
    %1531 = vmatpush.bf16.msra.mxu0 %v980
    %1532 = vmatpush.bf16.msra.mxu0 %v976
    %1533 = vmatpush.bf16.msra.mxu0 %v972
    %1534 = vmatmul.bf16.gmra.mxu0 %v107
    %v1535 = vpop.f32.mrf.mxu0
    %v1536 = vadd.f32 %v1522, %v1535
    %v1537 = vpop.f32.mrf.mxu0
    %v1538 = vadd.f32 %v1524, %v1537
    %1539 = vdwg.mxu0
    %1540 = vmatpush.bf16.msra.mxu0 %v1032
    %1541 = vmatpush.bf16.msra.mxu0 %v1028
    %1542 = vmatpush.bf16.msra.mxu0 %v1024
    %1543 = vmatpush.bf16.msra.mxu0 %v1020
    %1544 = vmatpush.bf16.msra.mxu0 %v1016
    %1545 = vmatpush.bf16.msra.mxu0 %v1012
    %1546 = vmatpush.bf16.msra.mxu0 %v1008
    %1547 = vmatpush.bf16.msra.mxu0 %v1004
    %1548 = vmatmul.bf16.gmra.mxu0 %v108
    %v1549 = vpop.f32.mrf.mxu0
    %v1550 = vadd.f32 %v1536, %v1549
    %v1551 = vpop.f32.mrf.mxu0
    %v1552 = vadd.f32 %v1538, %v1551
    %1553 = vdwg.mxu0
    %1554 = vmatpush.bf16.msra.mxu0 %v1064
    %1555 = vmatpush.bf16.msra.mxu0 %v1060
    %1556 = vmatpush.bf16.msra.mxu0 %v1056
    %1557 = vmatpush.bf16.msra.mxu0 %v1052
    %1558 = vmatpush.bf16.msra.mxu0 %v1048
    %1559 = vmatpush.bf16.msra.mxu0 %v1044
    %1560 = vmatpush.bf16.msra.mxu0 %v1040
    %1561 = vmatpush.bf16.msra.mxu0 %v1036
    %1562 = vmatmul.bf16.gmra.mxu0 %v109
    %v1563 = vpop.f32.mrf.mxu0
    %v1564 = vadd.f32 %v1550, %v1563
    %v1565 = vpop.f32.mrf.mxu0
    %v1566 = vadd.f32 %v1552, %v1565
    %1567 = vdwg.mxu0
    %1568 = vmatpush.bf16.msra.mxu0 %v1096
    %1569 = vmatpush.bf16.msra.mxu0 %v1092
    %1570 = vmatpush.bf16.msra.mxu0 %v1088
    %1571 = vmatpush.bf16.msra.mxu0 %v1084
    %1572 = vmatpush.bf16.msra.mxu0 %v1080
    %1573 = vmatpush.bf16.msra.mxu0 %v1076
    %1574 = vmatpush.bf16.msra.mxu0 %v1072
    %1575 = vmatpush.bf16.msra.mxu0 %v1068
    %1576 = vmatmul.bf16.gmra.mxu0 %v110
    %v1577 = vpop.f32.mrf.mxu0
    %v1578 = vadd.f32 %v1564, %v1577
    %v1579 = vpop.f32.mrf.mxu0
    %v1580 = vadd.f32 %v1566, %v1579
    %1581 = vdwg.mxu0
    %1582 = vmatpush.bf16.msra.mxu0 0
    %1583 = vmatpush.bf16.msra.mxu0 0
    %1584 = vmatpush.bf16.msra.mxu0 0
    %1585 = vmatpush.bf16.msra.mxu0 0
    %1586 = vmatpush.bf16.msra.mxu0 0
    %1587 = vmatpush.bf16.msra.mxu0 0
    %1588 = vmatpush.bf16.msra.mxu0 0
    %1589 = vmatpush.bf16.msra.mxu0 %v1100
    %1590 = vmatmul.bf16.gmra.mxu0 %v1300
    %v1591 = vpop.f32.mrf.mxu0
    %v1592 = vadd.f32 %v1578, %v1591
    %v1593 = vpop.f32.mrf.mxu0
    %v1594 = vadd.f32 %v1580, %v1593
    %1595 = vdwg.mxu0
    %1596 = vmatpush.bf16.msra.mxu0 %v937
    %1597 = vmatpush.bf16.msra.mxu0 %v933
    %1598 = vmatpush.bf16.msra.mxu0 %v929
    %1599 = vmatpush.bf16.msra.mxu0 %v925
    %1600 = vmatpush.bf16.msra.mxu0 %v921
    %1601 = vmatpush.bf16.msra.mxu0 %v917
    %1602 = vmatpush.bf16.msra.mxu0 %v913
    %1603 = vmatpush.bf16.msra.mxu0 %v909
    %1604 = vmatmul.bf16.gmra.mxu0 %v105
    %v1605 = vpop.f32.mrf.mxu0
    %v1606 = vadd.f32 %v313, %v1605
    %v1607 = vpop.f32.mrf.mxu0
    %v1608 = vadd.f32 %v313, %v1607
    %1609 = vdwg.mxu0
    %1610 = vmatpush.bf16.msra.mxu0 %v969
    %1611 = vmatpush.bf16.msra.mxu0 %v965
    %1612 = vmatpush.bf16.msra.mxu0 %v961
    %1613 = vmatpush.bf16.msra.mxu0 %v957
    %1614 = vmatpush.bf16.msra.mxu0 %v953
    %1615 = vmatpush.bf16.msra.mxu0 %v949
    %1616 = vmatpush.bf16.msra.mxu0 %v945
    %1617 = vmatpush.bf16.msra.mxu0 %v941
    %1618 = vmatmul.bf16.gmra.mxu0 %v106
    %v1619 = vpop.f32.mrf.mxu0
    %v1620 = vadd.f32 %v1606, %v1619
    %v1621 = vpop.f32.mrf.mxu0
    %v1622 = vadd.f32 %v1608, %v1621
    %1623 = vdwg.mxu0
    %1624 = vmatpush.bf16.msra.mxu0 %v1001
    %1625 = vmatpush.bf16.msra.mxu0 %v997
    %1626 = vmatpush.bf16.msra.mxu0 %v993
    %1627 = vmatpush.bf16.msra.mxu0 %v989
    %1628 = vmatpush.bf16.msra.mxu0 %v985
    %1629 = vmatpush.bf16.msra.mxu0 %v981
    %1630 = vmatpush.bf16.msra.mxu0 %v977
    %1631 = vmatpush.bf16.msra.mxu0 %v973
    %1632 = vmatmul.bf16.gmra.mxu0 %v107
    %v1633 = vpop.f32.mrf.mxu0
    %v1634 = vadd.f32 %v1620, %v1633
    %v1635 = vpop.f32.mrf.mxu0
    %v1636 = vadd.f32 %v1622, %v1635
    %1637 = vdwg.mxu0
    %1638 = vmatpush.bf16.msra.mxu0 %v1033
    %1639 = vmatpush.bf16.msra.mxu0 %v1029
    %1640 = vmatpush.bf16.msra.mxu0 %v1025
    %1641 = vmatpush.bf16.msra.mxu0 %v1021
    %1642 = vmatpush.bf16.msra.mxu0 %v1017
    %1643 = vmatpush.bf16.msra.mxu0 %v1013
    %1644 = vmatpush.bf16.msra.mxu0 %v1009
    %1645 = vmatpush.bf16.msra.mxu0 %v1005
    %1646 = vmatmul.bf16.gmra.mxu0 %v108
    %v1647 = vpop.f32.mrf.mxu0
    %v1648 = vadd.f32 %v1634, %v1647
    %v1649 = vpop.f32.mrf.mxu0
    %v1650 = vadd.f32 %v1636, %v1649
    %1651 = vdwg.mxu0
    %1652 = vmatpush.bf16.msra.mxu0 %v1065
    %1653 = vmatpush.bf16.msra.mxu0 %v1061
    %1654 = vmatpush.bf16.msra.mxu0 %v1057
    %1655 = vmatpush.bf16.msra.mxu0 %v1053
    %1656 = vmatpush.bf16.msra.mxu0 %v1049
    %1657 = vmatpush.bf16.msra.mxu0 %v1045
    %1658 = vmatpush.bf16.msra.mxu0 %v1041
    %1659 = vmatpush.bf16.msra.mxu0 %v1037
    %1660 = vmatmul.bf16.gmra.mxu0 %v109
    %v1661 = vpop.f32.mrf.mxu0
    %v1662 = vadd.f32 %v1648, %v1661
    %v1663 = vpop.f32.mrf.mxu0
    %v1664 = vadd.f32 %v1650, %v1663
    %1665 = vdwg.mxu0
    %1666 = vmatpush.bf16.msra.mxu0 %v1097
    %1667 = vmatpush.bf16.msra.mxu0 %v1093
    %1668 = vmatpush.bf16.msra.mxu0 %v1089
    %1669 = vmatpush.bf16.msra.mxu0 %v1085
    %1670 = vmatpush.bf16.msra.mxu0 %v1081
    %1671 = vmatpush.bf16.msra.mxu0 %v1077
    %1672 = vmatpush.bf16.msra.mxu0 %v1073
    %1673 = vmatpush.bf16.msra.mxu0 %v1069
    %1674 = vmatmul.bf16.gmra.mxu0 %v110
    %v1675 = vpop.f32.mrf.mxu0
    %v1676 = vadd.f32 %v1662, %v1675
    %v1677 = vpop.f32.mrf.mxu0
    %v1678 = vadd.f32 %v1664, %v1677
    %1679 = vdwg.mxu0
    %1680 = vmatpush.bf16.msra.mxu0 0
    %1681 = vmatpush.bf16.msra.mxu0 0
    %1682 = vmatpush.bf16.msra.mxu0 0
    %1683 = vmatpush.bf16.msra.mxu0 0
    %1684 = vmatpush.bf16.msra.mxu0 0
    %1685 = vmatpush.bf16.msra.mxu0 0
    %1686 = vmatpush.bf16.msra.mxu0 0
    %1687 = vmatpush.bf16.msra.mxu0 %v1101
    %1688 = vmatmul.bf16.gmra.mxu0 %v1300
    %v1689 = vpop.f32.mrf.mxu0
    %v1690 = vadd.f32 %v1676, %v1689
    %v1691 = vpop.f32.mrf.mxu0
    %v1692 = vadd.f32 %v1678, %v1691
    %1693 = vdwg.mxu0
    %vm1694 = vcmp.gt.f32.partialorder %v1396, 0.0
    %vm1695 = vcmp.gt.f32.partialorder %v1494, 0.0
    %vm1696 = vcmp.gt.f32.partialorder %v1592, 0.0
    %vm1697 = vcmp.gt.f32.partialorder %v1690, 0.0
    %vm1698 = vcmp.gt.f32.partialorder %v1398, 0.0
    %vm1699 = vcmp.gt.f32.partialorder %v1496, 0.0
    %vm1700 = vcmp.gt.f32.partialorder %v1594, 0.0
    %vm1701 = vcmp.gt.f32.partialorder %v1692, 0.0
    %v1702 = vmul.f32 %v1396, 0.2
    %v1703 = vmul.f32 %v1494, 0.2
    %v1704 = vmul.f32 %v1592, 0.2
    %v1705 = vmul.f32 %v1690, 0.2
    %v1706 = vmul.f32 %v1398, 0.2
    %v1707 = vmul.f32 %v1496, 0.2
    %v1708 = vmul.f32 %v1594, 0.2
    %v1709 = vmul.f32 %v1692, 0.2
    %v1710 = vsel %vm1694, %v1396, %v1702
    %v1711 = vsel %vm1695, %v1494, %v1703
    %v1712 = vsel %vm1696, %v1592, %v1704
    %v1713 = vsel %vm1697, %v1690, %v1705
    %v1714 = vsel %vm1698, %v1398, %v1706
    %v1715 = vsel %vm1699, %v1496, %v1707
    %v1716 = vsel %vm1700, %v1594, %v1708
    %v1717 = vsel %vm1701, %v1692, %v1709
    %v1718 = vpack.c.bf16 %v1714, %v1710
    %v1719 = vpack.c.bf16 %v1715, %v1711
    %v1720 = vpack.c.bf16 %v1716, %v1712
    %v1721 = vpack.c.bf16 %v1717, %v1713
    %v1722 = vld [vmem:[#allocation9] sm:$0xff]
    %v1723 = vld [vmem:[#allocation9 + $0x8] sm:$0xff]
    %v1724 = vld [vmem:[#allocation9 + $0x10] sm:$0xff]
    %v1725 = vld [vmem:[#allocation9 + $0x18] sm:$0xff]
    %v1726 = vld [vmem:[#allocation9 + $0x20] sm:$0xff]
    %v1727 = vld [vmem:[#allocation9 + $0x28] sm:$0xff]
    %v1728 = vld [vmem:[#allocation9 + $0x30] sm:$0xff]
    %v1729 = vld [vmem:[#allocation9 + $0x38] sm:$0xff]
    %v1730 = vld [vmem:[#allocation9 + $0x40] sm:$0xff]
    %v1731 = vld [vmem:[#allocation9 + $0x48] sm:$0xff]
    %v1732 = vld [vmem:[#allocation9 + $0x50] sm:$0xff]
    %v1733 = vld [vmem:[#allocation9 + $0x58] sm:$0xff]
    %v1734 = vld [vmem:[#allocation9 + $0x60] sm:$0xff]
    %v1735 = vld [vmem:[#allocation9 + $0x68] sm:$0xff]
    %v1736 = vld [vmem:[#allocation9 + $0x70] sm:$0xff]
    %v1737 = vld [vmem:[#allocation9 + $0x78] sm:$0xff]
    %v1738 = vld [vmem:[#allocation9 + $0x80] sm:$0xff]
    %v1739 = vld [vmem:[#allocation9 + $0x88] sm:$0xff]
    %v1740 = vld [vmem:[#allocation9 + $0x90] sm:$0xff]
    %v1741 = vld [vmem:[#allocation9 + $0x98] sm:$0xff]
    %v1742 = vld [vmem:[#allocation9 + $0xa0] sm:$0xff]
    %v1743 = vld [vmem:[#allocation9 + $0xa8] sm:$0xff]
    %v1744 = vld [vmem:[#allocation9 + $0xb0] sm:$0xff]
    %v1745 = vld [vmem:[#allocation9 + $0xb8] sm:$0xff]
    %v1746 = vld [vmem:[#allocation9 + $0xc0] sm:$0xff]
    %v1747 = vld [vmem:[#allocation9 + $0xc8] sm:$0xff]
    %v1748 = vld [vmem:[#allocation9 + $0xd0] sm:$0xff]
    %v1749 = vld [vmem:[#allocation9 + $0xd8] sm:$0xff]
    %v1750 = vld [vmem:[#allocation9 + $0xe0] sm:$0xff]
    %v1751 = vld [vmem:[#allocation9 + $0xe8] sm:$0xff]
    %v1752 = vld [vmem:[#allocation9 + $0xf0] sm:$0xff]
    %v1753 = vld [vmem:[#allocation9 + $0xf8] sm:$0xff]
    %v1754 = vld [vmem:[#allocation9 + $0x100] sm:$0xff]
    %v1755 = vld [vmem:[#allocation9 + $0x108] sm:$0xff]
    %v1756 = vld [vmem:[#allocation9 + $0x110] sm:$0xff]
    %v1757 = vld [vmem:[#allocation9 + $0x118] sm:$0xff]
    %v1758 = vld [vmem:[#allocation9 + $0x120] sm:$0xff]
    %v1759 = vld [vmem:[#allocation9 + $0x128] sm:$0xff]
    %v1760 = vld [vmem:[#allocation9 + $0x130] sm:$0xff]
    %v1761 = vld [vmem:[#allocation9 + $0x138] sm:$0xff]
    %v1762 = vld [vmem:[#allocation9 + $0x140] sm:$0xff]
    %v1763 = vld [vmem:[#allocation9 + $0x148] sm:$0xff]
    %v1764 = vld [vmem:[#allocation9 + $0x150] sm:$0xff]
    %v1765 = vld [vmem:[#allocation9 + $0x158] sm:$0xff]
    %v1766 = vld [vmem:[#allocation9 + $0x160] sm:$0xff]
    %v1767 = vld [vmem:[#allocation9 + $0x168] sm:$0xff]
    %v1768 = vld [vmem:[#allocation9 + $0x170] sm:$0xff]
    %v1769 = vld [vmem:[#allocation9 + $0x178] sm:$0xff]
    %v1770 = vld [vmem:[#allocation9 + $0x180] sm:$0xff]
    %v1771 = vld [vmem:[#allocation9 + $0x188] sm:$0xff]
    %v1772 = vld [vmem:[#allocation9 + $0x190] sm:$0xff]
    %v1773 = vld [vmem:[#allocation9 + $0x198] sm:$0xff]
    %v1774 = vld [vmem:[#allocation9 + $0x1a0] sm:$0xff]
    %v1775 = vld [vmem:[#allocation9 + $0x1a8] sm:$0xff]
    %v1776 = vld [vmem:[#allocation9 + $0x1b0] sm:$0xff]
    %v1777 = vld [vmem:[#allocation9 + $0x1b8] sm:$0xff]
    %v1778 = vld [vmem:[#allocation9 + $0x1c0] sm:$0xff]
    %v1779 = vld [vmem:[#allocation9 + $0x1c8] sm:$0xff]
    %v1780 = vld [vmem:[#allocation9 + $0x1d0] sm:$0xff]
    %v1781 = vld [vmem:[#allocation9 + $0x1d8] sm:$0xff]
    %v1782 = vld [vmem:[#allocation9 + $0x1e0] sm:$0xff]
    %v1783 = vld [vmem:[#allocation9 + $0x1e8] sm:$0xff]
    %v1784 = vld [vmem:[#allocation9 + $0x1f0] sm:$0xff]
    %v1785 = vld [vmem:[#allocation9 + $0x1f8] sm:$0xff]
    %v1786 = vld [vmem:[%s4] sm:$0x3]
    %v1788 = vperm.slane %v1786, 0
    %v1789 = vperm.slane %v1786, 1
    %v1856 = vunpack.c.l.b16 %v1722
    %v1857 = vunpack.c.h.b16 %v1722
    %v1858 = vunpack.c.l.b16 %v1723
    %v1859 = vunpack.c.h.b16 %v1723
    %v1860 = vunpack.c.l.b16 %v1724
    %v1861 = vunpack.c.h.b16 %v1724
    %v1862 = vunpack.c.l.b16 %v1725
    %v1863 = vunpack.c.h.b16 %v1725
    %v1864 = vunpack.c.l.b16 %v1726
    %v1865 = vunpack.c.h.b16 %v1726
    %v1866 = vunpack.c.l.b16 %v1727
    %v1867 = vunpack.c.h.b16 %v1727
    %v1868 = vunpack.c.l.b16 %v1728
    %v1869 = vunpack.c.h.b16 %v1728
    %v1870 = vunpack.c.l.b16 %v1729
    %v1871 = vunpack.c.h.b16 %v1729
    %v1872 = vunpack.c.l.b16 %v1730
    %v1873 = vunpack.c.h.b16 %v1730
    %v1874 = vunpack.c.l.b16 %v1731
    %v1875 = vunpack.c.h.b16 %v1731
    %v1876 = vunpack.c.l.b16 %v1732
    %v1877 = vunpack.c.h.b16 %v1732
    %v1878 = vunpack.c.l.b16 %v1733
    %v1879 = vunpack.c.h.b16 %v1733
    %v1880 = vunpack.c.l.b16 %v1734
    %v1881 = vunpack.c.h.b16 %v1734
    %v1882 = vunpack.c.l.b16 %v1735
    %v1883 = vunpack.c.h.b16 %v1735
    %v1884 = vunpack.c.l.b16 %v1736
    %v1885 = vunpack.c.h.b16 %v1736
    %v1886 = vunpack.c.l.b16 %v1737
    %v1887 = vunpack.c.h.b16 %v1737
    %v1888 = vunpack.c.l.b16 %v1738
    %v1889 = vunpack.c.h.b16 %v1738
    %v1890 = vunpack.c.l.b16 %v1739
    %v1891 = vunpack.c.h.b16 %v1739
    %v1892 = vunpack.c.l.b16 %v1740
    %v1893 = vunpack.c.h.b16 %v1740
    %v1894 = vunpack.c.l.b16 %v1741
    %v1895 = vunpack.c.h.b16 %v1741
    %v1896 = vunpack.c.l.b16 %v1742
    %v1897 = vunpack.c.h.b16 %v1742
    %v1898 = vunpack.c.l.b16 %v1743
    %v1899 = vunpack.c.h.b16 %v1743
    %v1900 = vunpack.c.l.b16 %v1744
    %v1901 = vunpack.c.h.b16 %v1744
    %v1902 = vunpack.c.l.b16 %v1745
    %v1903 = vunpack.c.h.b16 %v1745
    %v1904 = vunpack.c.l.b16 %v1746
    %v1905 = vunpack.c.h.b16 %v1746
    %v1906 = vunpack.c.l.b16 %v1747
    %v1907 = vunpack.c.h.b16 %v1747
    %v1908 = vunpack.c.l.b16 %v1748
    %v1909 = vunpack.c.h.b16 %v1748
    %v1910 = vunpack.c.l.b16 %v1749
    %v1911 = vunpack.c.h.b16 %v1749
    %v1912 = vunpack.c.l.b16 %v1750
    %v1913 = vunpack.c.h.b16 %v1750
    %v1914 = vunpack.c.l.b16 %v1751
    %v1915 = vunpack.c.h.b16 %v1751
    %v1916 = vunpack.c.l.b16 %v1752
    %v1917 = vunpack.c.h.b16 %v1752
    %v1918 = vunpack.c.l.b16 %v1753
    %v1919 = vunpack.c.h.b16 %v1753
    %v1920 = vunpack.c.l.b16 %v1754
    %v1921 = vunpack.c.h.b16 %v1754
    %v1922 = vunpack.c.l.b16 %v1755
    %v1923 = vunpack.c.h.b16 %v1755
    %v1924 = vunpack.c.l.b16 %v1756
    %v1925 = vunpack.c.h.b16 %v1756
    %v1926 = vunpack.c.l.b16 %v1757
    %v1927 = vunpack.c.h.b16 %v1757
    %v1928 = vunpack.c.l.b16 %v1758
    %v1929 = vunpack.c.h.b16 %v1758
    %v1930 = vunpack.c.l.b16 %v1759
    %v1931 = vunpack.c.h.b16 %v1759
    %v1932 = vunpack.c.l.b16 %v1760
    %v1933 = vunpack.c.h.b16 %v1760
    %v1934 = vunpack.c.l.b16 %v1761
    %v1935 = vunpack.c.h.b16 %v1761
    %v1936 = vunpack.c.l.b16 %v1762
    %v1937 = vunpack.c.h.b16 %v1762
    %v1938 = vunpack.c.l.b16 %v1763
    %v1939 = vunpack.c.h.b16 %v1763
    %v1940 = vunpack.c.l.b16 %v1764
    %v1941 = vunpack.c.h.b16 %v1764
    %v1942 = vunpack.c.l.b16 %v1765
    %v1943 = vunpack.c.h.b16 %v1765
    %v1944 = vunpack.c.l.b16 %v1766
    %v1945 = vunpack.c.h.b16 %v1766
    %v1946 = vunpack.c.l.b16 %v1767
    %v1947 = vunpack.c.h.b16 %v1767
    %v1948 = vunpack.c.l.b16 %v1768
    %v1949 = vunpack.c.h.b16 %v1768
    %v1950 = vunpack.c.l.b16 %v1769
    %v1951 = vunpack.c.h.b16 %v1769
    %v1952 = vunpack.c.l.b16 %v1770
    %v1953 = vunpack.c.h.b16 %v1770
    %v1954 = vunpack.c.l.b16 %v1771
    %v1955 = vunpack.c.h.b16 %v1771
    %v1956 = vunpack.c.l.b16 %v1772
    %v1957 = vunpack.c.h.b16 %v1772
    %v1958 = vunpack.c.l.b16 %v1773
    %v1959 = vunpack.c.h.b16 %v1773
    %v1960 = vunpack.c.l.b16 %v1774
    %v1961 = vunpack.c.h.b16 %v1774
    %v1962 = vunpack.c.l.b16 %v1775
    %v1963 = vunpack.c.h.b16 %v1775
    %v1964 = vunpack.c.l.b16 %v1776
    %v1965 = vunpack.c.h.b16 %v1776
    %v1966 = vunpack.c.l.b16 %v1777
    %v1967 = vunpack.c.h.b16 %v1777
    %v1968 = vunpack.c.l.b16 %v1778
    %v1969 = vunpack.c.h.b16 %v1778
    %v1970 = vunpack.c.l.b16 %v1779
    %v1971 = vunpack.c.h.b16 %v1779
    %v1972 = vunpack.c.l.b16 %v1780
    %v1973 = vunpack.c.h.b16 %v1780
    %v1974 = vunpack.c.l.b16 %v1781
    %v1975 = vunpack.c.h.b16 %v1781
    %v1976 = vunpack.c.l.b16 %v1782
    %v1977 = vunpack.c.h.b16 %v1782
    %v1978 = vunpack.c.l.b16 %v1783
    %v1979 = vunpack.c.h.b16 %v1783
    %v1980 = vunpack.c.l.b16 %v1784
    %v1981 = vunpack.c.h.b16 %v1784
    %v1982 = vunpack.c.l.b16 %v1785
    %v1983 = vunpack.c.h.b16 %v1785
    %v1984 = vpack.c.b16 %v1858, %v1856
    %v1985 = vpack.c.b16 %v1859, %v1857
    %v1986 = vpack.c.b16 %v1862, %v1860
    %v1987 = vpack.c.b16 %v1863, %v1861
    %v1988 = vpack.c.b16 %v1866, %v1864
    %v1989 = vpack.c.b16 %v1867, %v1865
    %v1990 = vpack.c.b16 %v1870, %v1868
    %v1991 = vpack.c.b16 %v1871, %v1869
    %v1992 = vpack.c.b16 %v1874, %v1872
    %v1993 = vpack.c.b16 %v1875, %v1873
    %v1994 = vpack.c.b16 %v1878, %v1876
    %v1995 = vpack.c.b16 %v1879, %v1877
    %v1996 = vpack.c.b16 %v1882, %v1880
    %v1997 = vpack.c.b16 %v1883, %v1881
    %v1998 = vpack.c.b16 %v1886, %v1884
    %v1999 = vpack.c.b16 %v1887, %v1885
    %v2000 = vpack.c.b16 %v1890, %v1888
    %v2001 = vpack.c.b16 %v1891, %v1889
    %v2002 = vpack.c.b16 %v1894, %v1892
    %v2003 = vpack.c.b16 %v1895, %v1893
    %v2004 = vpack.c.b16 %v1898, %v1896
    %v2005 = vpack.c.b16 %v1899, %v1897
    %v2006 = vpack.c.b16 %v1902, %v1900
    %v2007 = vpack.c.b16 %v1903, %v1901
    %v2008 = vpack.c.b16 %v1906, %v1904
    %v2009 = vpack.c.b16 %v1907, %v1905
    %v2010 = vpack.c.b16 %v1910, %v1908
    %v2011 = vpack.c.b16 %v1911, %v1909
    %v2012 = vpack.c.b16 %v1914, %v1912
    %v2013 = vpack.c.b16 %v1915, %v1913
    %v2014 = vpack.c.b16 %v1918, %v1916
    %v2015 = vpack.c.b16 %v1919, %v1917
    %v2016 = vpack.c.b16 %v1922, %v1920
    %v2017 = vpack.c.b16 %v1923, %v1921
    %v2018 = vpack.c.b16 %v1926, %v1924
    %v2019 = vpack.c.b16 %v1927, %v1925
    %v2020 = vpack.c.b16 %v1930, %v1928
    %v2021 = vpack.c.b16 %v1931, %v1929
    %v2022 = vpack.c.b16 %v1934, %v1932
    %v2023 = vpack.c.b16 %v1935, %v1933
    %v2024 = vpack.c.b16 %v1938, %v1936
    %v2025 = vpack.c.b16 %v1939, %v1937
    %v2026 = vpack.c.b16 %v1942, %v1940
    %v2027 = vpack.c.b16 %v1943, %v1941
    %v2028 = vpack.c.b16 %v1946, %v1944
    %v2029 = vpack.c.b16 %v1947, %v1945
    %v2030 = vpack.c.b16 %v1950, %v1948
    %v2031 = vpack.c.b16 %v1951, %v1949
    %v2032 = vpack.c.b16 %v1954, %v1952
    %v2033 = vpack.c.b16 %v1955, %v1953
    %v2034 = vpack.c.b16 %v1958, %v1956
    %v2035 = vpack.c.b16 %v1959, %v1957
    %v2036 = vpack.c.b16 %v1962, %v1960
    %v2037 = vpack.c.b16 %v1963, %v1961
    %v2038 = vpack.c.b16 %v1966, %v1964
    %v2039 = vpack.c.b16 %v1967, %v1965
    %v2040 = vpack.c.b16 %v1970, %v1968
    %v2041 = vpack.c.b16 %v1971, %v1969
    %v2042 = vpack.c.b16 %v1974, %v1972
    %v2043 = vpack.c.b16 %v1975, %v1973
    %v2044 = vpack.c.b16 %v1978, %v1976
    %v2045 = vpack.c.b16 %v1979, %v1977
    %v2046 = vpack.c.b16 %v1982, %v1980
    %v2047 = vpack.c.b16 %v1983, %v1981
    %2112 = vmatpush.bf16.msra.mxu0 %v1998
    %2113 = vmatpush.bf16.msra.mxu0 %v1996
    %2114 = vmatpush.bf16.msra.mxu0 %v1994
    %2115 = vmatpush.bf16.msra.mxu0 %v1992
    %2116 = vmatpush.bf16.msra.mxu0 %v1990
    %2117 = vmatpush.bf16.msra.mxu0 %v1988
    %2118 = vmatpush.bf16.msra.mxu0 %v1986
    %2119 = vmatpush.bf16.msra.mxu0 %v1984
    %2120 = vmatmul.bf16.gmra.mxu0 %v1718
    %v2121 = vpop.f32.mrf.mxu0
    %v2122 = vadd.f32 %v1788, %v2121
    %v2123 = vpop.f32.mrf.mxu0
    %v2124 = vadd.f32 %v1788, %v2123
    %2125 = vdwg.mxu0
    %2126 = vmatpush.bf16.msra.mxu0 %v2014
    %2127 = vmatpush.bf16.msra.mxu0 %v2012
    %2128 = vmatpush.bf16.msra.mxu0 %v2010
    %2129 = vmatpush.bf16.msra.mxu0 %v2008
    %2130 = vmatpush.bf16.msra.mxu0 %v2006
    %2131 = vmatpush.bf16.msra.mxu0 %v2004
    %2132 = vmatpush.bf16.msra.mxu0 %v2002
    %2133 = vmatpush.bf16.msra.mxu0 %v2000
    %2134 = vmatmul.bf16.gmra.mxu0 %v1719
    %v2135 = vpop.f32.mrf.mxu0
    %v2136 = vadd.f32 %v2122, %v2135
    %v2137 = vpop.f32.mrf.mxu0
    %v2138 = vadd.f32 %v2124, %v2137
    %2139 = vdwg.mxu0
    %2140 = vmatpush.bf16.msra.mxu0 %v2030
    %2141 = vmatpush.bf16.msra.mxu0 %v2028
    %2142 = vmatpush.bf16.msra.mxu0 %v2026
    %2143 = vmatpush.bf16.msra.mxu0 %v2024
    %2144 = vmatpush.bf16.msra.mxu0 %v2022
    %2145 = vmatpush.bf16.msra.mxu0 %v2020
    %2146 = vmatpush.bf16.msra.mxu0 %v2018
    %2147 = vmatpush.bf16.msra.mxu0 %v2016
    %2148 = vmatmul.bf16.gmra.mxu0 %v1720
    %v2149 = vpop.f32.mrf.mxu0
    %v2150 = vadd.f32 %v2136, %v2149
    %v2151 = vpop.f32.mrf.mxu0
    %v2152 = vadd.f32 %v2138, %v2151
    %2153 = vdwg.mxu0
    %2154 = vmatpush.bf16.msra.mxu0 %v2046
    %2155 = vmatpush.bf16.msra.mxu0 %v2044
    %2156 = vmatpush.bf16.msra.mxu0 %v2042
    %2157 = vmatpush.bf16.msra.mxu0 %v2040
    %2158 = vmatpush.bf16.msra.mxu0 %v2038
    %2159 = vmatpush.bf16.msra.mxu0 %v2036
    %2160 = vmatpush.bf16.msra.mxu0 %v2034
    %2161 = vmatpush.bf16.msra.mxu0 %v2032
    %2162 = vmatmul.bf16.gmra.mxu0 %v1721
    %v2163 = vpop.f32.mrf.mxu0
    %v2164 = vadd.f32 %v2150, %v2163
    %v2165 = vpop.f32.mrf.mxu0
    %v2166 = vadd.f32 %v2152, %v2165
    %2167 = vdwg.mxu0
    %2168 = vmatpush.bf16.msra.mxu0 %v1999
    %2169 = vmatpush.bf16.msra.mxu0 %v1997
    %2170 = vmatpush.bf16.msra.mxu0 %v1995
    %2171 = vmatpush.bf16.msra.mxu0 %v1993
    %2172 = vmatpush.bf16.msra.mxu0 %v1991
    %2173 = vmatpush.bf16.msra.mxu0 %v1989
    %2174 = vmatpush.bf16.msra.mxu0 %v1987
    %2175 = vmatpush.bf16.msra.mxu0 %v1985
    %2176 = vmatmul.bf16.gmra.mxu0 %v1718
    %v2177 = vpop.f32.mrf.mxu0
    %v2178 = vadd.f32 %v1789, %v2177
    %v2179 = vpop.f32.mrf.mxu0
    %v2180 = vadd.f32 %v1789, %v2179
    %2181 = vdwg.mxu0
    %2182 = vmatpush.bf16.msra.mxu0 %v2015
    %2183 = vmatpush.bf16.msra.mxu0 %v2013
    %2184 = vmatpush.bf16.msra.mxu0 %v2011
    %2185 = vmatpush.bf16.msra.mxu0 %v2009
    %2186 = vmatpush.bf16.msra.mxu0 %v2007
    %2187 = vmatpush.bf16.msra.mxu0 %v2005
    %2188 = vmatpush.bf16.msra.mxu0 %v2003
    %2189 = vmatpush.bf16.msra.mxu0 %v2001
    %2190 = vmatmul.bf16.gmra.mxu0 %v1719
    %v2191 = vpop.f32.mrf.mxu0
    %v2192 = vadd.f32 %v2178, %v2191
    %v2193 = vpop.f32.mrf.mxu0
    %v2194 = vadd.f32 %v2180, %v2193
    %2195 = vdwg.mxu0
    %2196 = vmatpush.bf16.msra.mxu0 %v2031
    %2197 = vmatpush.bf16.msra.mxu0 %v2029
    %2198 = vmatpush.bf16.msra.mxu0 %v2027
    %2199 = vmatpush.bf16.msra.mxu0 %v2025
    %2200 = vmatpush.bf16.msra.mxu0 %v2023
    %2201 = vmatpush.bf16.msra.mxu0 %v2021
    %2202 = vmatpush.bf16.msra.mxu0 %v2019
    %2203 = vmatpush.bf16.msra.mxu0 %v2017
    %2204 = vmatmul.bf16.gmra.mxu0 %v1720
    %v2205 = vpop.f32.mrf.mxu0
    %v2206 = vadd.f32 %v2192, %v2205
    %v2207 = vpop.f32.mrf.mxu0
    %v2208 = vadd.f32 %v2194, %v2207
    %2209 = vdwg.mxu0
    %2210 = vmatpush.bf16.msra.mxu0 %v2047
    %2211 = vmatpush.bf16.msra.mxu0 %v2045
    %2212 = vmatpush.bf16.msra.mxu0 %v2043
    %2213 = vmatpush.bf16.msra.mxu0 %v2041
    %2214 = vmatpush.bf16.msra.mxu0 %v2039
    %2215 = vmatpush.bf16.msra.mxu0 %v2037
    %2216 = vmatpush.bf16.msra.mxu0 %v2035
    %2217 = vmatpush.bf16.msra.mxu0 %v2033
    %2218 = vmatmul.bf16.gmra.mxu0 %v1721
    %v2219 = vpop.f32.mrf.mxu0
    %v2220 = vadd.f32 %v2206, %v2219
    %v2221 = vpop.f32.mrf.mxu0
    %v2222 = vadd.f32 %v2208, %v2221
    %2223 = vdwg.mxu0
    %vm2224 = vcmp.gt.f32.partialorder %v2164, 0.0
    %vm2225 = vcmp.gt.f32.partialorder %v2220, 0.0
    %vm2226 = vcmp.gt.f32.partialorder %v2166, 0.0
    %vm2227 = vcmp.gt.f32.partialorder %v2222, 0.0
    %v2228 = vmul.f32 %v2164, 0.2
    %v2229 = vmul.f32 %v2220, 0.2
    %v2230 = vmul.f32 %v2166, 0.2
    %v2231 = vmul.f32 %v2222, 0.2
    %v2232 = vsel %vm2224, %v2164, %v2228
    %v2233 = vsel %vm2225, %v2220, %v2229
    %v2234 = vsel %vm2226, %v2166, %v2230
    %v2235 = vsel %vm2227, %v2222, %v2231
    %v2236 = vld [vmem:[%s5] sm:$0x3]
    %v2237 = vpack.c.bf16 %v2234, %v2232
    %v2238 = vpack.c.bf16 %v2235, %v2233
    %v2239 = vld [vmem:[#allocation2] sm:$0x1]
    %2241 = vset.pattern.permute.xlu0 0
    %2242 = vperm.xlu0 %2241, %v2239
    %v2243 = vpop.permute.xlu0 %2242
    %v2245 = vperm.slane %v2243, 0
    %2247 = vst [vmem:[#allocation1] ss:$9 sm:$0xff] %v2236
    %v2248 = vld [vmem:[#allocation1] sm:$0xff]
    %v2249 = vld [vmem:[#allocation1 + $0x9] sm:$0xff]
    %2252 = vmatpush.bf16.xpose.msra.mxu0 0
    %2253 = vmatpush.bf16.xpose.msra.mxu0 0
    %2254 = vmatpush.bf16.xpose.msra.mxu0 0
    %2255 = vmatpush.bf16.xpose.msra.mxu0 0
    %2256 = vmatpush.bf16.xpose.msra.mxu0 0
    %2257 = vmatpush.bf16.xpose.msra.mxu0 0
    %2258 = vmatpush.bf16.xpose.msra.mxu0 0
    %2259 = vmatpush.bf16.xpose.msra.mxu0 %v2237
    %2260 = vmatmul.bf16.gmra.mxu0 %v2248
    %v2261 = vpop.f32.mrf.mxu0
    %v2262 = vadd.f32 %v2245, %v2261
    %v2263 = vpop.f32.mrf.mxu0
    %2264 = vdwg.mxu0
    %2265 = vmatpush.bf16.xpose.msra.mxu0 0
    %2266 = vmatpush.bf16.xpose.msra.mxu0 0
    %2267 = vmatpush.bf16.xpose.msra.mxu0 0
    %2268 = vmatpush.bf16.xpose.msra.mxu0 0
    %2269 = vmatpush.bf16.xpose.msra.mxu0 0
    %2270 = vmatpush.bf16.xpose.msra.mxu0 0
    %2271 = vmatpush.bf16.xpose.msra.mxu0 0
    %2272 = vmatpush.bf16.xpose.msra.mxu0 %v2238
    %2273 = vmatmul.bf16.gmra.mxu0 %v2249
    %v2274 = vpop.f32.mrf.mxu0
    %v2275 = vadd.f32 %v2262, %v2274
    %v2276 = vpop.f32.mrf.mxu0
    %2277 = vdwg.mxu0
    %v2278 = vxor.u32 %v2275, 2147483648
    %v2279 = vmul.f32 %v2278, 1.442695
    %v2280 = vpow.pop %v2279
    %v2281 = vadd.f32 %v2280, 1.0
    %v2282 = vrcp.pop %v2281
    %v2283 = vmul.f32 %v2281, %v2282
    %v2284 = vsub.f32 1.0, %v2283
    %v2285 = vmul.f32 %v2282, %v2284
    %v2286 = vadd.f32 %v2282, %v2285
    %vm2287 = vweird.f32 %v2281
    %vm2288 = vweird.f32 %v2282
    %vm2289 = vmor %vm2287, %vm2288
    %v2290 = vsel %vm2289, %v2282, %v2286
    %v2291 = vand.u32 2147483647, %v2281
    %vm2292 = vcmp.eq.f32.partialorder %v2291, 8.507059e+37
    %v2293 = vand.u32 %v2281, 2147483648
    %v2294 = vor.u32 1.1754944e-38, %v2293
    %v2295 = vsel %vm2292, %v2294, %v2290
    %v2296 = vmul.f32 1.0, %v2295
    %vm2297 = vcmask 122880
    %2298 = vst.msk [vmem:[#allocation11] sm:$0x1] %vm2297, %v2296
    // Predicated region
    $region46: #{tpu_custom_call.1} parent=1 // pred_check
      _
    $region47: #{tpu_custom_call.1} parent=1 // pred_check_branch
      %2300 = sbr.rel (0) target = $region49
    $region48: #{tpu_custom_call.1} parent=1 // pred_region
      %2302 = vsyncadd [#allocation5], 0
      %s2304 = sshll.u32 [#allocation11], 4
      %s2305 = int_to_ptr.vmem [resolvable:$true] %s2304
      %s2306 = sshll.u32 %s7, 4
      %s2307 = int_to_ptr.hbm [resolvable:$true] %s2306
      %2309 = dma.vmem_to_hbm [thread:$0]  %s2305, 16, %s2307, [#allocation5]
    $region49: #{tpu_custom_call.1} parent=1 // pred_fallthru
      _
    // Predicated region
    $region50: #{tpu_custom_call.1} parent=1 // pred_check
      _
    $region51: #{tpu_custom_call.1} parent=1 // pred_check_branch
      %2311 = sbr.rel (0) target = $region53
    $region52: #{tpu_custom_call.1} parent=1 // pred_region
      %2313 = dma.done [#allocation5], 16
    $region53: #{tpu_custom_call.1} parent=1 // pred_fallthru
      _
    %2314 = vsyncpa [#allocation4], 1
    %2315 = vsyncpa [#allocation7], 1
    %2316 = vsyncpa [#allocation10], 1
    %2317 = vsyncpa [#allocation5], 1

</llo_original>
